<compile_context>
chip_gen: v5e
topology: v5e:2x2
jax: 0.10.0
libtpu: 0.0.40
codegen_flags: <defaults>
</compile_context>

<pallas_src>
import math
import functools

import jax
import jax.numpy as jnp
from jax import lax
from jax.experimental import pallas as pl
from jax.experimental.pallas import tpu as pltpu  # noqa: F401  (TPU backend)

# ----------------------------- configuration --------------------------------
D_MODEL = 32
N_HEAD = 4
HEAD_DIM = D_MODEL // N_HEAD
SEQ_LEN = 8
BATCH = 2
LN_EPS = 1e-5


def _gelu_exact(x):
    # nn.GELU() default (approximate='none'): 0.5 * x * (1 + erf(x / sqrt(2)))
    return 0.5 * x * (1.0 + lax.erf(x * (1.0 / math.sqrt(2.0))))


# ------------------------------- kernel --------------------------------------
def block_kernel(x_ref, cvec_ref, bqkv_ref, bfc_ref, bias_ref,
                 wqkv_ref, wattn_o_ref, wfc_ref, wmlp_o_ref,
                 out_ref, *, n_head):
    # x_ref: (B*T, C)  -- all batch elements flattened into rows.
    BT, C = x_ref.shape
    nh = n_head
    hd = C // nh
    scale = 1.0 / math.sqrt(hd)

    x = x_ref[...]                                   # (BT, C) f32

    cv = cvec_ref[...]                               # (6, C) packed vectors
    ln1_w, ln1_b = cv[0:1], cv[1:2]
    ln2_w, ln2_b = cv[2:3], cv[3:4]
    b_attn_o, b_mlp_o = cv[4:5], cv[5:6]

    # ---------------- LayerNorm 1 (all B*T rows at once) ----------------
    mu1 = jnp.mean(x, axis=-1, keepdims=True)
    var1 = jnp.mean((x - mu1) ** 2, axis=-1, keepdims=True)
    xn1 = (x - mu1) * lax.rsqrt(var1 + LN_EPS) * ln1_w + ln1_b

    # additive attention bias (0 / -1e30), block-diagonal causal, precomputed
    att_bias = bias_ref[...]                          # (BT, BT)

    # ---------------- causal self-attention, per head ----------------
    # Per-head weights/biases are stacked on leading dims -> only leading-dim
    # ref indexing here, no lane slicing and no concatenate.
    attn = jnp.zeros((BT, C), jnp.float32)
    for h in range(nh):                               # static, unrolled
        bh = bqkv_ref[h]                              # (3, hd): q/k/v biases
        qh = jnp.dot(xn1, wqkv_ref[0, h],
                     preferred_element_type=jnp.float32) + bh[0:1]   # (BT, hd)
        kh = jnp.dot(xn1, wqkv_ref[1, h],
                     preferred_element_type=jnp.float32) + bh[1:2]
        vh = jnp.dot(xn1, wqkv_ref[2, h],
                     preferred_element_type=jnp.float32) + bh[2:3]

        # scores over all B*T rows; cross-batch entries killed by att_bias
        s = lax.dot_general(qh, kh, (((1,), (1,)), ((), ())),
                            preferred_element_type=jnp.float32) * scale
        s = s + att_bias
        s = s - jnp.max(s, axis=-1, keepdims=True)
        p = jnp.exp(s)
        p = p * pl.reciprocal(jnp.sum(p, axis=-1, keepdims=True), approx=True)

        yh = jnp.dot(p, vh, preferred_element_type=jnp.float32)      # (BT, hd)
        # fold output projection per head: sum_h yh @ Wo[h]  ==  concat @ Wo
        attn = attn + jnp.dot(yh, wattn_o_ref[h],
                              preferred_element_type=jnp.float32)
    attn = attn + b_attn_o

    x1 = x + attn                                     # residual 1

    # ---------------- LayerNorm 2 ----------------
    mu2 = jnp.mean(x1, axis=-1, keepdims=True)
    var2 = jnp.mean((x1 - mu2) ** 2, axis=-1, keepdims=True)
    xn2 = (x1 - mu2) * lax.rsqrt(var2 + LN_EPS) * ln2_w + ln2_b

    # ---------------- MLP ----------------
    hfc = jnp.dot(xn2, wfc_ref[...],
                  preferred_element_type=jnp.float32) + bfc_ref[...]  # (BT, 4C)
    hfc = _gelu_exact(hfc)
    hmo = jnp.dot(hfc, wmlp_o_ref[...],
                  preferred_element_type=jnp.float32) + b_mlp_o       # (BT, C)

    out_ref[...] = x1 + hmo                           # residual 2


# ------------------------------- wrapper --------------------------------------
@jax.jit
def block_forward(x, params):
    """x: (B, T, C) float32.  params: dict of weights stored as (in, out)."""
    B, T, C = x.shape
    nh = N_HEAD
    hd = C // nh
    BT = B * T

    # flatten batch*time outside the kernel (free XLA reshape)
    x2d = x.reshape(BT, C)

    # consolidate the six length-C vectors into a single (6, C) slab / one DMA
    cvecs = jnp.concatenate(
        [params["ln1_w"], params["ln1_b"],
         params["ln2_w"], params["ln2_b"],
         params["b_attn_o"], params["b_mlp_o"]], axis=0)              # (6, C)

    # per-head Q/K/V weights: (3, nh, C, hd); per-head Q/K/V biases: (nh, 3, hd)
    wqkv = params["w_qkv"].reshape(C, 3, nh, hd).transpose(1, 2, 0, 3)
    bqkv = params["b_qkv"].reshape(3, nh, hd).transpose(1, 0, 2)
    # per-head attention output projection: (nh, hd, C)
    wattn_o = params["w_attn_o"].reshape(nh, hd, C)

    # block-diagonal causal additive bias over the flattened rows
    rows = jnp.arange(BT, dtype=jnp.int32)
    batch_id = rows // T
    keep = (rows[None, :] <= rows[:, None]) & \
           (batch_id[None, :] == batch_id[:, None])
    att_bias = jnp.where(keep, 0.0, -1e30).astype(jnp.float32)        # (BT, BT)

    out2d = pl.pallas_call(
        functools.partial(block_kernel, n_head=nh),
        out_shape=jax.ShapeDtypeStruct((BT, C), jnp.float32),
    )(x2d, cvecs, bqkv, params["b_fc"], att_bias,
      wqkv, wattn_o, params["w_fc"], params["w_mlp_o"])

    return out2d.reshape(B, T, C)


# --------------------------- pure-JAX reference --------------------------------
def block_reference(x, p):
    def ln(z, w, b):
        mu = jnp.mean(z, axis=-1, keepdims=True)
        var = jnp.mean((z - mu) ** 2, axis=-1, keepdims=True)
        return (z - mu) * lax.rsqrt(var + LN_EPS) * w[0] + b[0]

    B, T, C = x.shape
    xn1 = ln(x, p["ln1_w"], p["ln1_b"])
    qkv = xn1 @ p["w_qkv"] + p["b_qkv"][0]
    q, k, v = jnp.split(qkv, 3, axis=-1)
    q = q.reshape(B, T, N_HEAD, HEAD_DIM).transpose(0, 2, 1, 3)
    k = k.reshape(B, T, N_HEAD, HEAD_DIM).transpose(0, 2, 1, 3)
    v = v.reshape(B, T, N_HEAD, HEAD_DIM).transpose(0, 2, 1, 3)
    att = jnp.einsum("bhqd,bhkd->bhqk", q, k) / math.sqrt(HEAD_DIM)
    mask = jnp.tril(jnp.ones((T, T), dtype=bool))
    att = jnp.where(mask[None, None], att, -jnp.inf)
    att = jax.nn.softmax(att, axis=-1)
    y = jnp.einsum("bhqk,bhkd->bhqd", att, v)
    y = y.transpose(0, 2, 1, 3).reshape(B, T, C)
    y = y @ p["w_attn_o"] + p["b_attn_o"][0]
    x1 = x + y
    xn2 = ln(x1, p["ln2_w"], p["ln2_b"])
    h = xn2 @ p["w_fc"] + p["b_fc"][0]
    h = _gelu_exact(h)
    h = h @ p["w_mlp_o"] + p["b_mlp_o"][0]
    return x1 + h


# ----------------------------------- main --------------------------------------
if __name__ == "__main__":
    key = jax.random.PRNGKey(0)
    keys = jax.random.split(key, 16)
    C = D_MODEL

    def init_w(k, shape, fan_in):
        bound = 1.0 / math.sqrt(fan_in)
        return jax.random.uniform(k, shape, jnp.float32, -bound, bound)

    params = {
        "ln1_w": jnp.ones((1, C), jnp.float32),
        "ln1_b": jnp.zeros((1, C), jnp.float32),
        "ln2_w": jnp.ones((1, C), jnp.float32),
        "ln2_b": jnp.zeros((1, C), jnp.float32),
        # all linear weights stored as (in, out)  ==  PyTorch W.T
        "w_qkv":    init_w(keys[0], (C, 3 * C), C),
        "b_qkv":    init_w(keys[1], (1, 3 * C), C),
        "w_attn_o": init_w(keys[2], (C, C), C),
        "b_attn_o": init_w(keys[3], (1, C), C),
        "w_fc":     init_w(keys[4], (C, 4 * C), C),
        "b_fc":     init_w(keys[5], (1, 4 * C), C),
        "w_mlp_o":  init_w(keys[6], (4 * C, C), 4 * C),
        "b_mlp_o":  init_w(keys[7], (1, C), 4 * C),
    }

    x = jax.random.normal(keys[8], (BATCH, SEQ_LEN, C), jnp.float32)

    out = jax.block_until_ready(block_forward(x, params))
    ref = block_reference(x, params)

    assert out.shape == (BATCH, SEQ_LEN, C)
    # slightly relaxed tolerance: the softmax denominator uses the TPU EUP
    # approximate reciprocal (pl.reciprocal(..., approx=True)).
    max_err = jnp.max(jnp.abs(out - ref))
    assert jnp.allclose(out, ref, atol=5e-3, rtol=5e-3), f"max err {max_err}"

    print("KERNEL_OK")
</pallas_src>

<mosaic_0001>
module attributes {stable_mosaic.version = 11 : i64} {
  func.func @block_kernel(%arg0: memref<16x32xf32, #tpu.memory_space<vmem>>, %arg1: memref<6x32xf32, #tpu.memory_space<vmem>>, %arg2: memref<4x3x8xf32, #tpu.memory_space<vmem>>, %arg3: memref<1x128xf32, #tpu.memory_space<vmem>>, %arg4: memref<16x16xf32, #tpu.memory_space<vmem>>, %arg5: memref<3x4x32x8xf32, #tpu.memory_space<vmem>>, %arg6: memref<4x8x32xf32, #tpu.memory_space<vmem>>, %arg7: memref<32x128xf32, #tpu.memory_space<vmem>>, %arg8: memref<128x32xf32, #tpu.memory_space<vmem>>, %arg9: memref<16x32xf32, #tpu.memory_space<vmem>>) attributes {dimension_semantics = [], scalar_prefetch = 0 : i64, scratch_operands = 0 : i64, tpu.core_type = #tpu.core_type<tc>} {
    %c0 = arith.constant 0 : index
    %c0_0 = arith.constant 0 : index
    %0 = vector.load %arg0[%c0, %c0_0] : memref<16x32xf32, #tpu.memory_space<vmem>>, vector<16x32xf32>
    %c0_1 = arith.constant 0 : index
    %c0_2 = arith.constant 0 : index
    %1 = vector.load %arg1[%c0_1, %c0_2] : memref<6x32xf32, #tpu.memory_space<vmem>>, vector<6x32xf32>
    %2 = vector.extract_strided_slice %1 {offsets = [0, 0], sizes = [1, 32], strides = [1, 1]} : vector<6x32xf32> to vector<1x32xf32>
    %3 = vector.extract_strided_slice %1 {offsets = [1, 0], sizes = [1, 32], strides = [1, 1]} : vector<6x32xf32> to vector<1x32xf32>
    %4 = vector.extract_strided_slice %1 {offsets = [2, 0], sizes = [1, 32], strides = [1, 1]} : vector<6x32xf32> to vector<1x32xf32>
    %5 = vector.extract_strided_slice %1 {offsets = [3, 0], sizes = [1, 32], strides = [1, 1]} : vector<6x32xf32> to vector<1x32xf32>
    %6 = vector.extract_strided_slice %1 {offsets = [4, 0], sizes = [1, 32], strides = [1, 1]} : vector<6x32xf32> to vector<1x32xf32>
    %7 = vector.extract_strided_slice %1 {offsets = [5, 0], sizes = [1, 32], strides = [1, 1]} : vector<6x32xf32> to vector<1x32xf32>
    %cst = arith.constant dense<0.000000e+00> : vector<16xf32>
    %8 = vector.multi_reduction <add>, %0, %cst [1] : vector<16x32xf32> to vector<16xf32>
    %9 = vector.shape_cast %8 : vector<16xf32> to vector<16x1xf32>
    %cst_3 = arith.constant 3.200000e+01 : f32
    %10 = vector.broadcast %cst_3 : f32 to vector<16x1xf32>
    %11 = arith.divf %9, %10 : vector<16x1xf32>
    %12 = vector.broadcast %11 : vector<16x1xf32> to vector<16x32xf32>
    %13 = arith.subf %0, %12 : vector<16x32xf32>
    %14 = arith.mulf %13, %13 : vector<16x32xf32>
    %cst_4 = arith.constant dense<0.000000e+00> : vector<16xf32>
    %15 = vector.multi_reduction <add>, %14, %cst_4 [1] : vector<16x32xf32> to vector<16xf32>
    %16 = vector.shape_cast %15 : vector<16xf32> to vector<16x1xf32>
    %cst_5 = arith.constant 3.200000e+01 : f32
    %17 = vector.broadcast %cst_5 : f32 to vector<16x1xf32>
    %18 = arith.divf %16, %17 : vector<16x1xf32>
    %19 = vector.broadcast %11 : vector<16x1xf32> to vector<16x32xf32>
    %20 = arith.subf %0, %19 : vector<16x32xf32>
    %cst_6 = arith.constant 9.99999974E-6 : f32
    %21 = vector.broadcast %cst_6 : f32 to vector<16x1xf32>
    %22 = arith.addf %18, %21 : vector<16x1xf32>
    %23 = math.rsqrt %22 : vector<16x1xf32>
    %24 = vector.broadcast %23 : vector<16x1xf32> to vector<16x32xf32>
    %25 = arith.mulf %20, %24 : vector<16x32xf32>
    %26 = vector.broadcast %2 : vector<1x32xf32> to vector<16x32xf32>
    %27 = arith.mulf %25, %26 : vector<16x32xf32>
    %28 = vector.broadcast %3 : vector<1x32xf32> to vector<16x32xf32>
    %29 = arith.addf %27, %28 : vector<16x32xf32>
    %c0_7 = arith.constant 0 : index
    %c0_8 = arith.constant 0 : index
    %30 = vector.load %arg4[%c0_7, %c0_8] : memref<16x16xf32, #tpu.memory_space<vmem>>, vector<16x16xf32>
    %cst_9 = arith.constant 0.000000e+00 : f32
    %31 = vector.broadcast %cst_9 : f32 to vector<16x32xf32>
    %c0_10 = arith.constant 0 : index
    %c0_11 = arith.constant 0 : index
    %c0_12 = arith.constant 0 : index
    %32 = vector.load %arg2[%c0_10, %c0_11, %c0_12] : memref<4x3x8xf32, #tpu.memory_space<vmem>>, vector<1x3x8xf32>
    %33 = vector.shape_cast %32 : vector<1x3x8xf32> to vector<3x8xf32>
    %c0_13 = arith.constant 0 : index
    %c0_14 = arith.constant 0 : index
    %c0_15 = arith.constant 0 : index
    %c0_16 = arith.constant 0 : index
    %34 = vector.load %arg5[%c0_13, %c0_14, %c0_15, %c0_16] : memref<3x4x32x8xf32, #tpu.memory_space<vmem>>, vector<1x1x32x8xf32>
    %35 = vector.shape_cast %34 : vector<1x1x32x8xf32> to vector<32x8xf32>
    %cst_17 = arith.constant dense<0.000000e+00> : vector<16x8xf32>
    %36 = tpu.matmul %29, %35, %cst_17 {dimension_numbers = #tpu.dot_dimension_numbers<[1], [0], [0], [1], [0, 0, 1, 1], [], []>} : vector<16x32xf32>, vector<32x8xf32>, vector<16x8xf32> -> vector<16x8xf32>
    %37 = vector.extract_strided_slice %33 {offsets = [0, 0], sizes = [1, 8], strides = [1, 1]} : vector<3x8xf32> to vector<1x8xf32>
    %38 = vector.broadcast %37 : vector<1x8xf32> to vector<16x8xf32>
    %39 = arith.addf %36, %38 : vector<16x8xf32>
    %c1 = arith.constant 1 : index
    %c0_18 = arith.constant 0 : index
    %c0_19 = arith.constant 0 : index
    %c0_20 = arith.constant 0 : index
    %40 = vector.load %arg5[%c1, %c0_18, %c0_19, %c0_20] : memref<3x4x32x8xf32, #tpu.memory_space<vmem>>, vector<1x1x32x8xf32>
    %41 = vector.shape_cast %40 : vector<1x1x32x8xf32> to vector<32x8xf32>
    %cst_21 = arith.constant dense<0.000000e+00> : vector<16x8xf32>
    %42 = tpu.matmul %29, %41, %cst_21 {dimension_numbers = #tpu.dot_dimension_numbers<[1], [0], [0], [1], [0, 0, 1, 1], [], []>} : vector<16x32xf32>, vector<32x8xf32>, vector<16x8xf32> -> vector<16x8xf32>
    %43 = vector.extract_strided_slice %33 {offsets = [1, 0], sizes = [1, 8], strides = [1, 1]} : vector<3x8xf32> to vector<1x8xf32>
    %44 = vector.broadcast %43 : vector<1x8xf32> to vector<16x8xf32>
    %45 = arith.addf %42, %44 : vector<16x8xf32>
    %c2 = arith.constant 2 : index
    %c0_22 = arith.constant 0 : index
    %c0_23 = arith.constant 0 : index
    %c0_24 = arith.constant 0 : index
    %46 = vector.load %arg5[%c2, %c0_22, %c0_23, %c0_24] : memref<3x4x32x8xf32, #tpu.memory_space<vmem>>, vector<1x1x32x8xf32>
    %47 = vector.shape_cast %46 : vector<1x1x32x8xf32> to vector<32x8xf32>
    %cst_25 = arith.constant dense<0.000000e+00> : vector<16x8xf32>
    %48 = tpu.matmul %29, %47, %cst_25 {dimension_numbers = #tpu.dot_dimension_numbers<[1], [0], [0], [1], [0, 0, 1, 1], [], []>} : vector<16x32xf32>, vector<32x8xf32>, vector<16x8xf32> -> vector<16x8xf32>
    %49 = vector.extract_strided_slice %33 {offsets = [2, 0], sizes = [1, 8], strides = [1, 1]} : vector<3x8xf32> to vector<1x8xf32>
    %50 = vector.broadcast %49 : vector<1x8xf32> to vector<16x8xf32>
    %51 = arith.addf %48, %50 : vector<16x8xf32>
    %cst_26 = arith.constant dense<0.000000e+00> : vector<16x16xf32>
    %52 = tpu.matmul %39, %45, %cst_26 {dimension_numbers = #tpu.dot_dimension_numbers<[1], [1], [0], [0], [0, 0, 1, 0], [], []>} : vector<16x8xf32>, vector<16x8xf32>, vector<16x16xf32> -> vector<16x16xf32>
    %cst_27 = arith.constant 0.353553385 : f32
    %53 = vector.broadcast %cst_27 : f32 to vector<16x16xf32>
    %54 = arith.mulf %52, %53 : vector<16x16xf32>
    %55 = arith.addf %54, %30 : vector<16x16xf32>
    %cst_28 = arith.constant dense<0xFF800000> : vector<16xf32>
    %56 = vector.multi_reduction <maximumf>, %55, %cst_28 [1] : vector<16x16xf32> to vector<16xf32>
    %57 = vector.shape_cast %56 : vector<16xf32> to vector<16x1xf32>
    %58 = vector.broadcast %57 : vector<16x1xf32> to vector<16x16xf32>
    %59 = arith.subf %55, %58 : vector<16x16xf32>
    %60 = math.exp %59 : vector<16x16xf32>
    %cst_29 = arith.constant dense<0.000000e+00> : vector<16xf32>
    %61 = vector.multi_reduction <add>, %60, %cst_29 [1] : vector<16x16xf32> to vector<16xf32>
    %62 = vector.shape_cast %61 : vector<16xf32> to vector<16x1xf32>
    %63 = tpu.reciprocal %62 {approx = true} : vector<16x1xf32> -> vector<16x1xf32>
    %64 = vector.broadcast %63 : vector<16x1xf32> to vector<16x16xf32>
    %65 = arith.mulf %60, %64 : vector<16x16xf32>
    %cst_30 = arith.constant dense<0.000000e+00> : vector<16x8xf32>
    %66 = tpu.matmul %65, %51, %cst_30 {dimension_numbers = #tpu.dot_dimension_numbers<[1], [0], [0], [1], [0, 0, 1, 1], [], []>} : vector<16x16xf32>, vector<16x8xf32>, vector<16x8xf32> -> vector<16x8xf32>
    %c0_31 = arith.constant 0 : index
    %c0_32 = arith.constant 0 : index
    %c0_33 = arith.constant 0 : index
    %67 = vector.load %arg6[%c0_31, %c0_32, %c0_33] : memref<4x8x32xf32, #tpu.memory_space<vmem>>, vector<1x8x32xf32>
    %68 = vector.shape_cast %67 : vector<1x8x32xf32> to vector<8x32xf32>
    %cst_34 = arith.constant dense<0.000000e+00> : vector<16x32xf32>
    %69 = tpu.matmul %66, %68, %cst_34 {dimension_numbers = #tpu.dot_dimension_numbers<[1], [0], [0], [1], [0, 0, 1, 1], [], []>} : vector<16x8xf32>, vector<8x32xf32>, vector<16x32xf32> -> vector<16x32xf32>
    %70 = arith.addf %31, %69 : vector<16x32xf32>
    %c1_35 = arith.constant 1 : index
    %c0_36 = arith.constant 0 : index
    %c0_37 = arith.constant 0 : index
    %71 = vector.load %arg2[%c1_35, %c0_36, %c0_37] : memref<4x3x8xf32, #tpu.memory_space<vmem>>, vector<1x3x8xf32>
    %72 = vector.shape_cast %71 : vector<1x3x8xf32> to vector<3x8xf32>
    %c0_38 = arith.constant 0 : index
    %c1_39 = arith.constant 1 : index
    %c0_40 = arith.constant 0 : index
    %c0_41 = arith.constant 0 : index
    %73 = vector.load %arg5[%c0_38, %c1_39, %c0_40, %c0_41] : memref<3x4x32x8xf32, #tpu.memory_space<vmem>>, vector<1x1x32x8xf32>
    %74 = vector.shape_cast %73 : vector<1x1x32x8xf32> to vector<32x8xf32>
    %cst_42 = arith.constant dense<0.000000e+00> : vector<16x8xf32>
    %75 = tpu.matmul %29, %74, %cst_42 {dimension_numbers = #tpu.dot_dimension_numbers<[1], [0], [0], [1], [0, 0, 1, 1], [], []>} : vector<16x32xf32>, vector<32x8xf32>, vector<16x8xf32> -> vector<16x8xf32>
    %76 = vector.extract_strided_slice %72 {offsets = [0, 0], sizes = [1, 8], strides = [1, 1]} : vector<3x8xf32> to vector<1x8xf32>
    %77 = vector.broadcast %76 : vector<1x8xf32> to vector<16x8xf32>
    %78 = arith.addf %75, %77 : vector<16x8xf32>
    %c1_43 = arith.constant 1 : index
    %c1_44 = arith.constant 1 : index
    %c0_45 = arith.constant 0 : index
    %c0_46 = arith.constant 0 : index
    %79 = vector.load %arg5[%c1_43, %c1_44, %c0_45, %c0_46] : memref<3x4x32x8xf32, #tpu.memory_space<vmem>>, vector<1x1x32x8xf32>
    %80 = vector.shape_cast %79 : vector<1x1x32x8xf32> to vector<32x8xf32>
    %cst_47 = arith.constant dense<0.000000e+00> : vector<16x8xf32>
    %81 = tpu.matmul %29, %80, %cst_47 {dimension_numbers = #tpu.dot_dimension_numbers<[1], [0], [0], [1], [0, 0, 1, 1], [], []>} : vector<16x32xf32>, vector<32x8xf32>, vector<16x8xf32> -> vector<16x8xf32>
    %82 = vector.extract_strided_slice %72 {offsets = [1, 0], sizes = [1, 8], strides = [1, 1]} : vector<3x8xf32> to vector<1x8xf32>
    %83 = vector.broadcast %82 : vector<1x8xf32> to vector<16x8xf32>
    %84 = arith.addf %81, %83 : vector<16x8xf32>
    %c2_48 = arith.constant 2 : index
    %c1_49 = arith.constant 1 : index
    %c0_50 = arith.constant 0 : index
    %c0_51 = arith.constant 0 : index
    %85 = vector.load %arg5[%c2_48, %c1_49, %c0_50, %c0_51] : memref<3x4x32x8xf32, #tpu.memory_space<vmem>>, vector<1x1x32x8xf32>
    %86 = vector.shape_cast %85 : vector<1x1x32x8xf32> to vector<32x8xf32>
    %cst_52 = arith.constant dense<0.000000e+00> : vector<16x8xf32>
    %87 = tpu.matmul %29, %86, %cst_52 {dimension_numbers = #tpu.dot_dimension_numbers<[1], [0], [0], [1], [0, 0, 1, 1], [], []>} : vector<16x32xf32>, vector<32x8xf32>, vector<16x8xf32> -> vector<16x8xf32>
    %88 = vector.extract_strided_slice %72 {offsets = [2, 0], sizes = [1, 8], strides = [1, 1]} : vector<3x8xf32> to vector<1x8xf32>
    %89 = vector.broadcast %88 : vector<1x8xf32> to vector<16x8xf32>
    %90 = arith.addf %87, %89 : vector<16x8xf32>
    %cst_53 = arith.constant dense<0.000000e+00> : vector<16x16xf32>
    %91 = tpu.matmul %78, %84, %cst_53 {dimension_numbers = #tpu.dot_dimension_numbers<[1], [1], [0], [0], [0, 0, 1, 0], [], []>} : vector<16x8xf32>, vector<16x8xf32>, vector<16x16xf32> -> vector<16x16xf32>
    %cst_54 = arith.constant 0.353553385 : f32
    %92 = vector.broadcast %cst_54 : f32 to vector<16x16xf32>
    %93 = arith.mulf %91, %92 : vector<16x16xf32>
    %94 = arith.addf %93, %30 : vector<16x16xf32>
    %cst_55 = arith.constant dense<0xFF800000> : vector<16xf32>
    %95 = vector.multi_reduction <maximumf>, %94, %cst_55 [1] : vector<16x16xf32> to vector<16xf32>
    %96 = vector.shape_cast %95 : vector<16xf32> to vector<16x1xf32>
    %97 = vector.broadcast %96 : vector<16x1xf32> to vector<16x16xf32>
    %98 = arith.subf %94, %97 : vector<16x16xf32>
    %99 = math.exp %98 : vector<16x16xf32>
    %cst_56 = arith.constant dense<0.000000e+00> : vector<16xf32>
    %100 = vector.multi_reduction <add>, %99, %cst_56 [1] : vector<16x16xf32> to vector<16xf32>
    %101 = vector.shape_cast %100 : vector<16xf32> to vector<16x1xf32>
    %102 = tpu.reciprocal %101 {approx = true} : vector<16x1xf32> -> vector<16x1xf32>
    %103 = vector.broadcast %102 : vector<16x1xf32> to vector<16x16xf32>
    %104 = arith.mulf %99, %103 : vector<16x16xf32>
    %cst_57 = arith.constant dense<0.000000e+00> : vector<16x8xf32>
    %105 = tpu.matmul %104, %90, %cst_57 {dimension_numbers = #tpu.dot_dimension_numbers<[1], [0], [0], [1], [0, 0, 1, 1], [], []>} : vector<16x16xf32>, vector<16x8xf32>, vector<16x8xf32> -> vector<16x8xf32>
    %c1_58 = arith.constant 1 : index
    %c0_59 = arith.constant 0 : index
    %c0_60 = arith.constant 0 : index
    %106 = vector.load %arg6[%c1_58, %c0_59, %c0_60] : memref<4x8x32xf32, #tpu.memory_space<vmem>>, vector<1x8x32xf32>
    %107 = vector.shape_cast %106 : vector<1x8x32xf32> to vector<8x32xf32>
    %cst_61 = arith.constant dense<0.000000e+00> : vector<16x32xf32>
    %108 = tpu.matmul %105, %107, %cst_61 {dimension_numbers = #tpu.dot_dimension_numbers<[1], [0], [0], [1], [0, 0, 1, 1], [], []>} : vector<16x8xf32>, vector<8x32xf32>, vector<16x32xf32> -> vector<16x32xf32>
    %109 = arith.addf %70, %108 : vector<16x32xf32>
    %c2_62 = arith.constant 2 : index
    %c0_63 = arith.constant 0 : index
    %c0_64 = arith.constant 0 : index
    %110 = vector.load %arg2[%c2_62, %c0_63, %c0_64] : memref<4x3x8xf32, #tpu.memory_space<vmem>>, vector<1x3x8xf32>
    %111 = vector.shape_cast %110 : vector<1x3x8xf32> to vector<3x8xf32>
    %c0_65 = arith.constant 0 : index
    %c2_66 = arith.constant 2 : index
    %c0_67 = arith.constant 0 : index
    %c0_68 = arith.constant 0 : index
    %112 = vector.load %arg5[%c0_65, %c2_66, %c0_67, %c0_68] : memref<3x4x32x8xf32, #tpu.memory_space<vmem>>, vector<1x1x32x8xf32>
    %113 = vector.shape_cast %112 : vector<1x1x32x8xf32> to vector<32x8xf32>
    %cst_69 = arith.constant dense<0.000000e+00> : vector<16x8xf32>
    %114 = tpu.matmul %29, %113, %cst_69 {dimension_numbers = #tpu.dot_dimension_numbers<[1], [0], [0], [1], [0, 0, 1, 1], [], []>} : vector<16x32xf32>, vector<32x8xf32>, vector<16x8xf32> -> vector<16x8xf32>
    %115 = vector.extract_strided_slice %111 {offsets = [0, 0], sizes = [1, 8], strides = [1, 1]} : vector<3x8xf32> to vector<1x8xf32>
    %116 = vector.broadcast %115 : vector<1x8xf32> to vector<16x8xf32>
    %117 = arith.addf %114, %116 : vector<16x8xf32>
    %c1_70 = arith.constant 1 : index
    %c2_71 = arith.constant 2 : index
    %c0_72 = arith.constant 0 : index
    %c0_73 = arith.constant 0 : index
    %118 = vector.load %arg5[%c1_70, %c2_71, %c0_72, %c0_73] : memref<3x4x32x8xf32, #tpu.memory_space<vmem>>, vector<1x1x32x8xf32>
    %119 = vector.shape_cast %118 : vector<1x1x32x8xf32> to vector<32x8xf32>
    %cst_74 = arith.constant dense<0.000000e+00> : vector<16x8xf32>
    %120 = tpu.matmul %29, %119, %cst_74 {dimension_numbers = #tpu.dot_dimension_numbers<[1], [0], [0], [1], [0, 0, 1, 1], [], []>} : vector<16x32xf32>, vector<32x8xf32>, vector<16x8xf32> -> vector<16x8xf32>
    %121 = vector.extract_strided_slice %111 {offsets = [1, 0], sizes = [1, 8], strides = [1, 1]} : vector<3x8xf32> to vector<1x8xf32>
    %122 = vector.broadcast %121 : vector<1x8xf32> to vector<16x8xf32>
    %123 = arith.addf %120, %122 : vector<16x8xf32>
    %c2_75 = arith.constant 2 : index
    %c2_76 = arith.constant 2 : index
    %c0_77 = arith.constant 0 : index
    %c0_78 = arith.constant 0 : index
    %124 = vector.load %arg5[%c2_75, %c2_76, %c0_77, %c0_78] : memref<3x4x32x8xf32, #tpu.memory_space<vmem>>, vector<1x1x32x8xf32>
    %125 = vector.shape_cast %124 : vector<1x1x32x8xf32> to vector<32x8xf32>
    %cst_79 = arith.constant dense<0.000000e+00> : vector<16x8xf32>
    %126 = tpu.matmul %29, %125, %cst_79 {dimension_numbers = #tpu.dot_dimension_numbers<[1], [0], [0], [1], [0, 0, 1, 1], [], []>} : vector<16x32xf32>, vector<32x8xf32>, vector<16x8xf32> -> vector<16x8xf32>
    %127 = vector.extract_strided_slice %111 {offsets = [2, 0], sizes = [1, 8], strides = [1, 1]} : vector<3x8xf32> to vector<1x8xf32>
    %128 = vector.broadcast %127 : vector<1x8xf32> to vector<16x8xf32>
    %129 = arith.addf %126, %128 : vector<16x8xf32>
    %cst_80 = arith.constant dense<0.000000e+00> : vector<16x16xf32>
    %130 = tpu.matmul %117, %123, %cst_80 {dimension_numbers = #tpu.dot_dimension_numbers<[1], [1], [0], [0], [0, 0, 1, 0], [], []>} : vector<16x8xf32>, vector<16x8xf32>, vector<16x16xf32> -> vector<16x16xf32>
    %cst_81 = arith.constant 0.353553385 : f32
    %131 = vector.broadcast %cst_81 : f32 to vector<16x16xf32>
    %132 = arith.mulf %130, %131 : vector<16x16xf32>
    %133 = arith.addf %132, %30 : vector<16x16xf32>
    %cst_82 = arith.constant dense<0xFF800000> : vector<16xf32>
    %134 = vector.multi_reduction <maximumf>, %133, %cst_82 [1] : vector<16x16xf32> to vector<16xf32>
    %135 = vector.shape_cast %134 : vector<16xf32> to vector<16x1xf32>
    %136 = vector.broadcast %135 : vector<16x1xf32> to vector<16x16xf32>
    %137 = arith.subf %133, %136 : vector<16x16xf32>
    %138 = math.exp %137 : vector<16x16xf32>
    %cst_83 = arith.constant dense<0.000000e+00> : vector<16xf32>
    %139 = vector.multi_reduction <add>, %138, %cst_83 [1] : vector<16x16xf32> to vector<16xf32>
    %140 = vector.shape_cast %139 : vector<16xf32> to vector<16x1xf32>
    %141 = tpu.reciprocal %140 {approx = true} : vector<16x1xf32> -> vector<16x1xf32>
    %142 = vector.broadcast %141 : vector<16x1xf32> to vector<16x16xf32>
    %143 = arith.mulf %138, %142 : vector<16x16xf32>
    %cst_84 = arith.constant dense<0.000000e+00> : vector<16x8xf32>
    %144 = tpu.matmul %143, %129, %cst_84 {dimension_numbers = #tpu.dot_dimension_numbers<[1], [0], [0], [1], [0, 0, 1, 1], [], []>} : vector<16x16xf32>, vector<16x8xf32>, vector<16x8xf32> -> vector<16x8xf32>
    %c2_85 = arith.constant 2 : index
    %c0_86 = arith.constant 0 : index
    %c0_87 = arith.constant 0 : index
    %145 = vector.load %arg6[%c2_85, %c0_86, %c0_87] : memref<4x8x32xf32, #tpu.memory_space<vmem>>, vector<1x8x32xf32>
    %146 = vector.shape_cast %145 : vector<1x8x32xf32> to vector<8x32xf32>
    %cst_88 = arith.constant dense<0.000000e+00> : vector<16x32xf32>
    %147 = tpu.matmul %144, %146, %cst_88 {dimension_numbers = #tpu.dot_dimension_numbers<[1], [0], [0], [1], [0, 0, 1, 1], [], []>} : vector<16x8xf32>, vector<8x32xf32>, vector<16x32xf32> -> vector<16x32xf32>
    %148 = arith.addf %109, %147 : vector<16x32xf32>
    %c3 = arith.constant 3 : index
    %c0_89 = arith.constant 0 : index
    %c0_90 = arith.constant 0 : index
    %149 = vector.load %arg2[%c3, %c0_89, %c0_90] : memref<4x3x8xf32, #tpu.memory_space<vmem>>, vector<1x3x8xf32>
    %150 = vector.shape_cast %149 : vector<1x3x8xf32> to vector<3x8xf32>
    %c0_91 = arith.constant 0 : index
    %c3_92 = arith.constant 3 : index
    %c0_93 = arith.constant 0 : index
    %c0_94 = arith.constant 0 : index
    %151 = vector.load %arg5[%c0_91, %c3_92, %c0_93, %c0_94] : memref<3x4x32x8xf32, #tpu.memory_space<vmem>>, vector<1x1x32x8xf32>
    %152 = vector.shape_cast %151 : vector<1x1x32x8xf32> to vector<32x8xf32>
    %cst_95 = arith.constant dense<0.000000e+00> : vector<16x8xf32>
    %153 = tpu.matmul %29, %152, %cst_95 {dimension_numbers = #tpu.dot_dimension_numbers<[1], [0], [0], [1], [0, 0, 1, 1], [], []>} : vector<16x32xf32>, vector<32x8xf32>, vector<16x8xf32> -> vector<16x8xf32>
    %154 = vector.extract_strided_slice %150 {offsets = [0, 0], sizes = [1, 8], strides = [1, 1]} : vector<3x8xf32> to vector<1x8xf32>
    %155 = vector.broadcast %154 : vector<1x8xf32> to vector<16x8xf32>
    %156 = arith.addf %153, %155 : vector<16x8xf32>
    %c1_96 = arith.constant 1 : index
    %c3_97 = arith.constant 3 : index
    %c0_98 = arith.constant 0 : index
    %c0_99 = arith.constant 0 : index
    %157 = vector.load %arg5[%c1_96, %c3_97, %c0_98, %c0_99] : memref<3x4x32x8xf32, #tpu.memory_space<vmem>>, vector<1x1x32x8xf32>
    %158 = vector.shape_cast %157 : vector<1x1x32x8xf32> to vector<32x8xf32>
    %cst_100 = arith.constant dense<0.000000e+00> : vector<16x8xf32>
    %159 = tpu.matmul %29, %158, %cst_100 {dimension_numbers = #tpu.dot_dimension_numbers<[1], [0], [0], [1], [0, 0, 1, 1], [], []>} : vector<16x32xf32>, vector<32x8xf32>, vector<16x8xf32> -> vector<16x8xf32>
    %160 = vector.extract_strided_slice %150 {offsets = [1, 0], sizes = [1, 8], strides = [1, 1]} : vector<3x8xf32> to vector<1x8xf32>
    %161 = vector.broadcast %160 : vector<1x8xf32> to vector<16x8xf32>
    %162 = arith.addf %159, %161 : vector<16x8xf32>
    %c2_101 = arith.constant 2 : index
    %c3_102 = arith.constant 3 : index
    %c0_103 = arith.constant 0 : index
    %c0_104 = arith.constant 0 : index
    %163 = vector.load %arg5[%c2_101, %c3_102, %c0_103, %c0_104] : memref<3x4x32x8xf32, #tpu.memory_space<vmem>>, vector<1x1x32x8xf32>
    %164 = vector.shape_cast %163 : vector<1x1x32x8xf32> to vector<32x8xf32>
    %cst_105 = arith.constant dense<0.000000e+00> : vector<16x8xf32>
    %165 = tpu.matmul %29, %164, %cst_105 {dimension_numbers = #tpu.dot_dimension_numbers<[1], [0], [0], [1], [0, 0, 1, 1], [], []>} : vector<16x32xf32>, vector<32x8xf32>, vector<16x8xf32> -> vector<16x8xf32>
    %166 = vector.extract_strided_slice %150 {offsets = [2, 0], sizes = [1, 8], strides = [1, 1]} : vector<3x8xf32> to vector<1x8xf32>
    %167 = vector.broadcast %166 : vector<1x8xf32> to vector<16x8xf32>
    %168 = arith.addf %165, %167 : vector<16x8xf32>
    %cst_106 = arith.constant dense<0.000000e+00> : vector<16x16xf32>
    %169 = tpu.matmul %156, %162, %cst_106 {dimension_numbers = #tpu.dot_dimension_numbers<[1], [1], [0], [0], [0, 0, 1, 0], [], []>} : vector<16x8xf32>, vector<16x8xf32>, vector<16x16xf32> -> vector<16x16xf32>
    %cst_107 = arith.constant 0.353553385 : f32
    %170 = vector.broadcast %cst_107 : f32 to vector<16x16xf32>
    %171 = arith.mulf %169, %170 : vector<16x16xf32>
    %172 = arith.addf %171, %30 : vector<16x16xf32>
    %cst_108 = arith.constant dense<0xFF800000> : vector<16xf32>
    %173 = vector.multi_reduction <maximumf>, %172, %cst_108 [1] : vector<16x16xf32> to vector<16xf32>
    %174 = vector.shape_cast %173 : vector<16xf32> to vector<16x1xf32>
    %175 = vector.broadcast %174 : vector<16x1xf32> to vector<16x16xf32>
    %176 = arith.subf %172, %175 : vector<16x16xf32>
    %177 = math.exp %176 : vector<16x16xf32>
    %cst_109 = arith.constant dense<0.000000e+00> : vector<16xf32>
    %178 = vector.multi_reduction <add>, %177, %cst_109 [1] : vector<16x16xf32> to vector<16xf32>
    %179 = vector.shape_cast %178 : vector<16xf32> to vector<16x1xf32>
    %180 = tpu.reciprocal %179 {approx = true} : vector<16x1xf32> -> vector<16x1xf32>
    %181 = vector.broadcast %180 : vector<16x1xf32> to vector<16x16xf32>
    %182 = arith.mulf %177, %181 : vector<16x16xf32>
    %cst_110 = arith.constant dense<0.000000e+00> : vector<16x8xf32>
    %183 = tpu.matmul %182, %168, %cst_110 {dimension_numbers = #tpu.dot_dimension_numbers<[1], [0], [0], [1], [0, 0, 1, 1], [], []>} : vector<16x16xf32>, vector<16x8xf32>, vector<16x8xf32> -> vector<16x8xf32>
    %c3_111 = arith.constant 3 : index
    %c0_112 = arith.constant 0 : index
    %c0_113 = arith.constant 0 : index
    %184 = vector.load %arg6[%c3_111, %c0_112, %c0_113] : memref<4x8x32xf32, #tpu.memory_space<vmem>>, vector<1x8x32xf32>
    %185 = vector.shape_cast %184 : vector<1x8x32xf32> to vector<8x32xf32>
    %cst_114 = arith.constant dense<0.000000e+00> : vector<16x32xf32>
    %186 = tpu.matmul %183, %185, %cst_114 {dimension_numbers = #tpu.dot_dimension_numbers<[1], [0], [0], [1], [0, 0, 1, 1], [], []>} : vector<16x8xf32>, vector<8x32xf32>, vector<16x32xf32> -> vector<16x32xf32>
    %187 = arith.addf %148, %186 : vector<16x32xf32>
    %188 = vector.broadcast %6 : vector<1x32xf32> to vector<16x32xf32>
    %189 = arith.addf %187, %188 : vector<16x32xf32>
    %190 = arith.addf %0, %189 : vector<16x32xf32>
    %cst_115 = arith.constant dense<0.000000e+00> : vector<16xf32>
    %191 = vector.multi_reduction <add>, %190, %cst_115 [1] : vector<16x32xf32> to vector<16xf32>
    %192 = vector.shape_cast %191 : vector<16xf32> to vector<16x1xf32>
    %cst_116 = arith.constant 3.200000e+01 : f32
    %193 = vector.broadcast %cst_116 : f32 to vector<16x1xf32>
    %194 = arith.divf %192, %193 : vector<16x1xf32>
    %195 = vector.broadcast %194 : vector<16x1xf32> to vector<16x32xf32>
    %196 = arith.subf %190, %195 : vector<16x32xf32>
    %197 = arith.mulf %196, %196 : vector<16x32xf32>
    %cst_117 = arith.constant dense<0.000000e+00> : vector<16xf32>
    %198 = vector.multi_reduction <add>, %197, %cst_117 [1] : vector<16x32xf32> to vector<16xf32>
    %199 = vector.shape_cast %198 : vector<16xf32> to vector<16x1xf32>
    %cst_118 = arith.constant 3.200000e+01 : f32
    %200 = vector.broadcast %cst_118 : f32 to vector<16x1xf32>
    %201 = arith.divf %199, %200 : vector<16x1xf32>
    %202 = vector.broadcast %194 : vector<16x1xf32> to vector<16x32xf32>
    %203 = arith.subf %190, %202 : vector<16x32xf32>
    %cst_119 = arith.constant 9.99999974E-6 : f32
    %204 = vector.broadcast %cst_119 : f32 to vector<16x1xf32>
    %205 = arith.addf %201, %204 : vector<16x1xf32>
    %206 = math.rsqrt %205 : vector<16x1xf32>
    %207 = vector.broadcast %206 : vector<16x1xf32> to vector<16x32xf32>
    %208 = arith.mulf %203, %207 : vector<16x32xf32>
    %209 = vector.broadcast %4 : vector<1x32xf32> to vector<16x32xf32>
    %210 = arith.mulf %208, %209 : vector<16x32xf32>
    %211 = vector.broadcast %5 : vector<1x32xf32> to vector<16x32xf32>
    %212 = arith.addf %210, %211 : vector<16x32xf32>
    %c0_120 = arith.constant 0 : index
    %c0_121 = arith.constant 0 : index
    %213 = vector.load %arg7[%c0_120, %c0_121] : memref<32x128xf32, #tpu.memory_space<vmem>>, vector<32x128xf32>
    %cst_122 = arith.constant dense<0.000000e+00> : vector<16x128xf32>
    %214 = tpu.matmul %212, %213, %cst_122 {dimension_numbers = #tpu.dot_dimension_numbers<[1], [0], [0], [1], [0, 0, 1, 1], [], []>} : vector<16x32xf32>, vector<32x128xf32>, vector<16x128xf32> -> vector<16x128xf32>
    %c0_123 = arith.constant 0 : index
    %c0_124 = arith.constant 0 : index
    %215 = vector.load %arg3[%c0_123, %c0_124] : memref<1x128xf32, #tpu.memory_space<vmem>>, vector<1x128xf32>
    %216 = vector.broadcast %215 : vector<1x128xf32> to vector<16x128xf32>
    %217 = arith.addf %214, %216 : vector<16x128xf32>
    %cst_125 = arith.constant 5.000000e-01 : f32
    %218 = vector.broadcast %cst_125 : f32 to vector<16x128xf32>
    %219 = arith.mulf %218, %217 : vector<16x128xf32>
    %cst_126 = arith.constant 0.707106769 : f32
    %220 = vector.broadcast %cst_126 : f32 to vector<16x128xf32>
    %221 = arith.mulf %217, %220 : vector<16x128xf32>
    %222 = math.erf %221 : vector<16x128xf32>
    %cst_127 = arith.constant 1.000000e+00 : f32
    %223 = vector.broadcast %cst_127 : f32 to vector<16x128xf32>
    %224 = arith.addf %223, %222 : vector<16x128xf32>
    %225 = arith.mulf %219, %224 : vector<16x128xf32>
    %c0_128 = arith.constant 0 : index
    %c0_129 = arith.constant 0 : index
    %226 = vector.load %arg8[%c0_128, %c0_129] : memref<128x32xf32, #tpu.memory_space<vmem>>, vector<128x32xf32>
    %cst_130 = arith.constant dense<0.000000e+00> : vector<16x32xf32>
    %227 = tpu.matmul %225, %226, %cst_130 {dimension_numbers = #tpu.dot_dimension_numbers<[1], [0], [0], [1], [0, 0, 1, 1], [], []>} : vector<16x128xf32>, vector<128x32xf32>, vector<16x32xf32> -> vector<16x32xf32>
    %228 = vector.broadcast %7 : vector<1x32xf32> to vector<16x32xf32>
    %229 = arith.addf %227, %228 : vector<16x32xf32>
    %230 = arith.addf %190, %229 : vector<16x32xf32>
    %c0_131 = arith.constant 0 : index
    %c0_132 = arith.constant 0 : index
    %231 = vector.load %arg9[%c0_131, %c0_132] : memref<16x32xf32, #tpu.memory_space<vmem>>, vector<16x32xf32>
    tpu.vector_store %arg9[%c0_131, %c0_132], %230 {strides = array<i32>} : memref<16x32xf32, #tpu.memory_space<vmem>>, vector<16x32xf32>,
    return
  }
}

</mosaic_0001>

<llo_original>
// kernel: block_forward.1
$region0: #{block_forward.1}
  #allocation0 [shape = 'u32[]', space=smem, size = 0x4, offset = 0x4, fixed_abs, tag = 'smem constant byte address 0x4 - core index']
  #allocation1 [shape = 'u32[72,128]{1,0:T(1,128)}', space=vmem, size = 0x9000, scoped, tag = 'internal scratch']
  %s0 = inlined_call_operand.vmem [shape: f32[16,32], index: 0, kind: input, shape index: {}]
  %s1 = inlined_call_operand.vmem [shape: f32[6,32], index: 1, kind: input, shape index: {}]
  %s2 = inlined_call_operand.vmem [shape: f32[4,3,8], index: 2, kind: input, shape index: {}]
  %s3 = inlined_call_operand.vmem [shape: f32[1,128], index: 3, kind: input, shape index: {}]
  %s4 = inlined_call_operand.vmem [shape: f32[16,16], index: 4, kind: input, shape index: {}]
  %s5 = inlined_call_operand.vmem [shape: f32[3,4,32,8], index: 5, kind: input, shape index: {}]
  %s6 = inlined_call_operand.vmem [shape: f32[4,8,32], index: 6, kind: input, shape index: {}]
  %s7 = inlined_call_operand.vmem [shape: f32[32,128], index: 7, kind: input, shape index: {}]
  %s8 = inlined_call_operand.vmem [shape: f32[128,32], index: 8, kind: input, shape index: {}]
  %s9 = inlined_call_operand.hbm [shape: f32[16,32], index: 9, kind: output, shape index: {}]
  %s10 = sld [smem:[#allocation0]]
  $region46: #{block_forward.1} parent=0
    _
  %s12 = ssub.s32 1, %s10
  %s13 = scalar_select 0, %s12, %s10
  $region1: #{block_forward.1} parent=0
    #allocation2 [shape = 'u8[8192]{0}', space=vmem, size = 0x2000, scoped, tag = 'output window, operand 0, single buffered']
    #allocation3 [shape = 's32[1]{0}', space=sflag, size = 0x4, scoped, tag = 'scoped memory for block_forward.1']
    %14 = vsyncpa [#allocation3], 0
    // Predicated region
    $region2: #{block_forward.1} parent=1 // pred_check
      _
    $region3: #{block_forward.1} parent=1 // pred_check_branch
      %16 = sbr.rel (0) target = $region5
    $region4: #{block_forward.1} parent=1 // pred_region
      _
    $region5: #{block_forward.1} parent=1 // pred_fallthru
      _
    // Predicated region
    $region6: #{block_forward.1} parent=1 // pred_check
      _
    $region7: #{block_forward.1} parent=1 // pred_check_branch
      %18 = sbr.rel (0) target = $region9
    $region8: #{block_forward.1} parent=1 // pred_region
      _
    $region9: #{block_forward.1} parent=1 // pred_fallthru
      _
    // Predicated region
    $region10: #{block_forward.1} parent=1 // pred_check
      _
    $region11: #{block_forward.1} parent=1 // pred_check_branch
      %20 = sbr.rel (0) target = $region13
    $region12: #{block_forward.1} parent=1 // pred_region
      _
    $region13: #{block_forward.1} parent=1 // pred_fallthru
      _
    // Predicated region
    $region14: #{block_forward.1} parent=1 // pred_check
      _
    $region15: #{block_forward.1} parent=1 // pred_check_branch
      %22 = sbr.rel (0) target = $region17
    $region16: #{block_forward.1} parent=1 // pred_region
      _
    $region17: #{block_forward.1} parent=1 // pred_fallthru
      _
    // Predicated region
    $region18: #{block_forward.1} parent=1 // pred_check
      _
    $region19: #{block_forward.1} parent=1 // pred_check_branch
      %24 = sbr.rel (0) target = $region21
    $region20: #{block_forward.1} parent=1 // pred_region
      _
    $region21: #{block_forward.1} parent=1 // pred_fallthru
      _
    // Predicated region
    $region22: #{block_forward.1} parent=1 // pred_check
      _
    $region23: #{block_forward.1} parent=1 // pred_check_branch
      %26 = sbr.rel (0) target = $region25
    $region24: #{block_forward.1} parent=1 // pred_region
      _
    $region25: #{block_forward.1} parent=1 // pred_fallthru
      _
    // Predicated region
    $region26: #{block_forward.1} parent=1 // pred_check
      _
    $region27: #{block_forward.1} parent=1 // pred_check_branch
      %28 = sbr.rel (0) target = $region29
    $region28: #{block_forward.1} parent=1 // pred_region
      _
    $region29: #{block_forward.1} parent=1 // pred_fallthru
      _
    // Predicated region
    $region30: #{block_forward.1} parent=1 // pred_check
      _
    $region31: #{block_forward.1} parent=1 // pred_check_branch
      %30 = sbr.rel (0) target = $region33
    $region32: #{block_forward.1} parent=1 // pred_region
      _
    $region33: #{block_forward.1} parent=1 // pred_fallthru
      _
    // Predicated region
    $region34: #{block_forward.1} parent=1 // pred_check
      _
    $region35: #{block_forward.1} parent=1 // pred_check_branch
      %32 = sbr.rel (0) target = $region37
    $region36: #{block_forward.1} parent=1 // pred_region
      _
    $region37: #{block_forward.1} parent=1 // pred_fallthru
      _
    %v33 = vld [vmem:[%s0] sm:$0xff]
    %v34 = vld [vmem:[%s0 + $0x8] sm:$0xff]
    %v35 = vld [vmem:[%s1] sm:$0x3f]
    %vm36 = vcmask 261120
    %v37 = vsel %vm36, %v33, 0.0
    %38 = vadd.xlane.f32.xlu0 %v37
    %v39 = vpop.xlane.xlu0 %38
    %v40 = vsel %vm36, %v34, 0.0
    %41 = vadd.xlane.f32.xlu0 %v40
    %v42 = vpop.xlane.xlu0 %41
    %v43 = vrcp.pop 32.0
    %v44 = vmul.f32 32.0, %v43
    %v45 = vsub.f32 1.0, %v44
    %v46 = vmul.f32 %v43, %v45
    %v47 = vadd.f32 %v43, %v46
    %vm48 = vweird.f32 %v43
    %v49 = vsel %vm48, %v43, %v47
    %v50 = vmul.f32 %v39, %v49
    %v51 = vmul.f32 %v42, %v49
    %v52 = vsub.f32 %v33, %v50
    %v53 = vsub.f32 %v34, %v51
    %v54 = vmul.f32 %v52, %v52
    %v55 = vmul.f32 %v53, %v53
    %v56 = vsel %vm36, %v54, 0.0
    %57 = vadd.xlane.f32.xlu0 %v56
    %v58 = vpop.xlane.xlu0 %57
    %v59 = vsel %vm36, %v55, 0.0
    %60 = vadd.xlane.f32.xlu0 %v59
    %v61 = vpop.xlane.xlu0 %60
    %v62 = vmul.f32 %v58, %v49
    %v63 = vmul.f32 %v61, %v49
    %v64 = vadd.f32 %v62, 1e-05
    %v65 = vadd.f32 %v63, 1e-05
    %v66 = vrsqrt.pop %v64
    %v67 = vmul.f32 %v66, %v64
    %v68 = vmul.f32 %v67, %v66
    %v69 = vmul.f32 0.5, %v68
    %v70 = vsub.f32 1.5, %v69
    %v71 = vmul.f32 %v66, %v70
    %vm72 = vweird.f32 %v64
    %vm73 = vweird.f32 %v66
    %vm74 = vmor %vm72, %vm73
    %v75 = vsel %vm74, %v66, %v71
    %v76 = vrsqrt.pop %v65
    %v77 = vmul.f32 %v76, %v65
    %v78 = vmul.f32 %v77, %v76
    %v79 = vmul.f32 0.5, %v78
    %v80 = vsub.f32 1.5, %v79
    %v81 = vmul.f32 %v76, %v80
    %vm82 = vweird.f32 %v65
    %vm83 = vweird.f32 %v76
    %vm84 = vmor %vm82, %vm83
    %v85 = vsel %vm84, %v76, %v81
    %v86 = vmul.f32 %v52, %v75
    %v87 = vmul.f32 %v53, %v85
    %v88 = vperm.slane %v35, 0
    %v89 = vmul.f32 %v86, %v88
    %v90 = vmul.f32 %v87, %v88
    %v91 = vperm.slane %v35, 1
    %v92 = vadd.f32 %v89, %v91
    %v93 = vadd.f32 %v90, %v91
    %v94 = vld [vmem:[%s4] sm:$0xff]
    %v95 = vld [vmem:[%s4 + $0x8] sm:$0xff]
    %v96 = vld [vmem:[%s2] sm:$0x7]
    %v97 = vld [vmem:[%s5] sm:$0xff]
    %v98 = vld [vmem:[%s5 + $0x8] sm:$0xff]
    %v99 = vld [vmem:[%s5 + $0x10] sm:$0xff]
    %v100 = vld [vmem:[%s5 + $0x18] sm:$0xff]
    %v101 = vperm.slane %v96, 0
    %v103 = vsel %vm36, %v92, 0
    %v106 = vsel %vm36, %v93, 0
    %108 = vmatpush.msra.mxu0 0.0
    %109 = vmatpush.msra.mxu0 0.0
    %110 = vmatpush.msra.mxu0 0.0
    %111 = vmatpush.msra.mxu0 0.0
    %112 = vmatpush.msra.mxu0 0.0
    %113 = vmatpush.msra.mxu0 0.0
    %114 = vmatpush.msra.mxu0 0.0
    %115 = vmatpush.msra.mxu0 0.0
    %116 = vmatpush.msra.mxu0 0.0
    %117 = vmatpush.msra.mxu0 0.0
    %118 = vmatpush.msra.mxu0 0.0
    %119 = vmatpush.msra.mxu0 0.0
    %120 = vmatpush.msra.mxu0 %v100
    %121 = vmatpush.msra.mxu0 %v99
    %122 = vmatpush.msra.mxu0 %v98
    %123 = vmatpush.msra.mxu0 %v97
    %124 = vmatmul.f32.gmra.mxu0 %v103
    %v125 = vpop.f32.mrf.mxu0
    %v126 = vadd.f32 %v101, %v125
    %127 = vmatmul.f32.gmra.mxu0 %v106
    %v128 = vpop.f32.mrf.mxu0
    %v129 = vadd.f32 %v101, %v128
    %130 = vdwg.mxu0
    %s131 = scalar_lea.vmem %s5, 128
    %v132 = vld [vmem:[%s131] sm:$0xff]
    %v133 = vld [vmem:[%s131 + $0x8] sm:$0xff]
    %v134 = vld [vmem:[%s131 + $0x10] sm:$0xff]
    %v135 = vld [vmem:[%s131 + $0x18] sm:$0xff]
    %v136 = vperm.slane %v96, 1
    %137 = vmatpush.msra.mxu0 0.0
    %138 = vmatpush.msra.mxu0 0.0
    %139 = vmatpush.msra.mxu0 0.0
    %140 = vmatpush.msra.mxu0 0.0
    %141 = vmatpush.msra.mxu0 0.0
    %142 = vmatpush.msra.mxu0 0.0
    %143 = vmatpush.msra.mxu0 0.0
    %144 = vmatpush.msra.mxu0 0.0
    %145 = vmatpush.msra.mxu0 0.0
    %146 = vmatpush.msra.mxu0 0.0
    %147 = vmatpush.msra.mxu0 0.0
    %148 = vmatpush.msra.mxu0 0.0
    %149 = vmatpush.msra.mxu0 %v135
    %150 = vmatpush.msra.mxu0 %v134
    %151 = vmatpush.msra.mxu0 %v133
    %152 = vmatpush.msra.mxu0 %v132
    %153 = vmatmul.f32.gmra.mxu0 %v103
    %v154 = vpop.f32.mrf.mxu0
    %v155 = vadd.f32 %v136, %v154
    %156 = vmatmul.f32.gmra.mxu0 %v106
    %v157 = vpop.f32.mrf.mxu0
    %v158 = vadd.f32 %v136, %v157
    %159 = vdwg.mxu0
    %s160 = scalar_lea.vmem %s5, 256
    %v161 = vld [vmem:[%s160] sm:$0xff]
    %v162 = vld [vmem:[%s160 + $0x8] sm:$0xff]
    %v163 = vld [vmem:[%s160 + $0x10] sm:$0xff]
    %v164 = vld [vmem:[%s160 + $0x18] sm:$0xff]
    %v165 = vperm.slane %v96, 2
    %166 = vmatpush.msra.mxu0 0.0
    %167 = vmatpush.msra.mxu0 0.0
    %168 = vmatpush.msra.mxu0 0.0
    %169 = vmatpush.msra.mxu0 0.0
    %170 = vmatpush.msra.mxu0 0.0
    %171 = vmatpush.msra.mxu0 0.0
    %172 = vmatpush.msra.mxu0 0.0
    %173 = vmatpush.msra.mxu0 0.0
    %174 = vmatpush.msra.mxu0 0.0
    %175 = vmatpush.msra.mxu0 0.0
    %176 = vmatpush.msra.mxu0 0.0
    %177 = vmatpush.msra.mxu0 0.0
    %178 = vmatpush.msra.mxu0 %v164
    %179 = vmatpush.msra.mxu0 %v163
    %180 = vmatpush.msra.mxu0 %v162
    %181 = vmatpush.msra.mxu0 %v161
    %182 = vmatmul.f32.gmra.mxu0 %v103
    %v183 = vpop.f32.mrf.mxu0
    %v184 = vadd.f32 %v165, %v183
    %185 = vmatmul.f32.gmra.mxu0 %v106
    %v186 = vpop.f32.mrf.mxu0
    %v187 = vadd.f32 %v165, %v186
    %188 = vdwg.mxu0
    %vm189 = vcmask 64512
    %v191 = vsel %vm189, %v126, 0
    %v194 = vsel %vm189, %v129, 0
    %v197 = vsel %vm189, %v155, 0
    %v200 = vsel %vm189, %v158, 0
    %202 = vmatpush.xpose.msra.mxu0 0.0
    %203 = vmatpush.xpose.msra.mxu0 0.0
    %204 = vmatpush.xpose.msra.mxu0 0.0
    %205 = vmatpush.xpose.msra.mxu0 0.0
    %206 = vmatpush.xpose.msra.mxu0 0.0
    %207 = vmatpush.xpose.msra.mxu0 0.0
    %208 = vmatpush.xpose.msra.mxu0 0.0
    %209 = vmatpush.xpose.msra.mxu0 0.0
    %210 = vmatpush.xpose.msra.mxu0 0.0
    %211 = vmatpush.xpose.msra.mxu0 0.0
    %212 = vmatpush.xpose.msra.mxu0 0.0
    %213 = vmatpush.xpose.msra.mxu0 0.0
    %214 = vmatpush.xpose.msra.mxu0 0.0
    %215 = vmatpush.xpose.msra.mxu0 0.0
    %216 = vmatpush.xpose.msra.mxu0 %v200
    %217 = vmatpush.xpose.msra.mxu0 %v197
    %218 = vmatmul.f32.gmra.mxu0 %v191
    %v219 = vpop.f32.mrf.mxu0
    %v220 = vadd.f32 0.0, %v219
    %221 = vmatmul.f32.gmra.mxu0 %v194
    %v222 = vpop.f32.mrf.mxu0
    %v223 = vadd.f32 0.0, %v222
    %224 = vdwg.mxu0
    %v225 = vmul.f32 %v220, 0.35355338
    %v226 = vmul.f32 %v223, 0.35355338
    %v227 = vadd.f32 %v225, %v94
    %v228 = vadd.f32 %v226, %v95
    %vm229 = vcmask 130048
    %v230 = vsel %vm229, %v227, -inf
    %231 = vmax.xlane.f32.xlu0 %v230
    %v232 = vpop.xlane.xlu0 %231
    %v233 = vsel %vm229, %v228, -inf
    %234 = vmax.xlane.f32.xlu0 %v233
    %v235 = vpop.xlane.xlu0 %234
    %v236 = vsub.f32 %v227, %v232
    %v237 = vsub.f32 %v228, %v235
    %v238 = vmul.f32 %v236, 1.442695
    %v239 = vpow.pop %v238
    %v240 = vmul.f32 %v237, 1.442695
    %v241 = vpow.pop %v240
    %v242 = vsel %vm229, %v239, 0.0
    %243 = vadd.xlane.f32.xlu0 %v242
    %v244 = vpop.xlane.xlu0 %243
    %v245 = vsel %vm229, %v241, 0.0
    %246 = vadd.xlane.f32.xlu0 %v245
    %v247 = vpop.xlane.xlu0 %246
    %v248 = vrcp.pop %v244
    %v249 = vrcp.pop %v247
    %v250 = vmul.f32 %v239, %v248
    %v251 = vmul.f32 %v241, %v249
    %v253 = vsel %vm229, %v250, 0
    %v256 = vsel %vm229, %v251, 0
    %258 = vmatpush.msra.mxu0 0.0
    %259 = vmatpush.msra.mxu0 0.0
    %260 = vmatpush.msra.mxu0 0.0
    %261 = vmatpush.msra.mxu0 0.0
    %262 = vmatpush.msra.mxu0 0.0
    %263 = vmatpush.msra.mxu0 0.0
    %264 = vmatpush.msra.mxu0 0.0
    %265 = vmatpush.msra.mxu0 0.0
    %266 = vmatpush.msra.mxu0 0.0
    %267 = vmatpush.msra.mxu0 0.0
    %268 = vmatpush.msra.mxu0 0.0
    %269 = vmatpush.msra.mxu0 0.0
    %270 = vmatpush.msra.mxu0 0.0
    %271 = vmatpush.msra.mxu0 0.0
    %272 = vmatpush.msra.mxu0 %v187
    %273 = vmatpush.msra.mxu0 %v184
    %274 = vmatmul.f32.gmra.mxu0 %v253
    %v275 = vpop.f32.mrf.mxu0
    %v276 = vadd.f32 0.0, %v275
    %277 = vmatmul.f32.gmra.mxu0 %v256
    %v278 = vpop.f32.mrf.mxu0
    %v279 = vadd.f32 0.0, %v278
    %280 = vdwg.mxu0
    %v281 = vld [vmem:[%s6] sm:$0xff]
    %s282 = scalar_lea.vmem %s2, 4
    %v283 = vld [vmem:[%s282] sm:$0x7]
    %s284 = scalar_lea.vmem %s5, 32
    %v285 = vld [vmem:[%s284] sm:$0xff]
    %v286 = vld [vmem:[%s284 + $0x8] sm:$0xff]
    %v287 = vld [vmem:[%s284 + $0x10] sm:$0xff]
    %v288 = vld [vmem:[%s284 + $0x18] sm:$0xff]
    %v289 = vperm.slane %v283, 0
    %290 = vmatpush.msra.mxu0 0.0
    %291 = vmatpush.msra.mxu0 0.0
    %292 = vmatpush.msra.mxu0 0.0
    %293 = vmatpush.msra.mxu0 0.0
    %294 = vmatpush.msra.mxu0 0.0
    %295 = vmatpush.msra.mxu0 0.0
    %296 = vmatpush.msra.mxu0 0.0
    %297 = vmatpush.msra.mxu0 0.0
    %298 = vmatpush.msra.mxu0 0.0
    %299 = vmatpush.msra.mxu0 0.0
    %300 = vmatpush.msra.mxu0 0.0
    %301 = vmatpush.msra.mxu0 0.0
    %302 = vmatpush.msra.mxu0 %v288
    %303 = vmatpush.msra.mxu0 %v287
    %304 = vmatpush.msra.mxu0 %v286
    %305 = vmatpush.msra.mxu0 %v285
    %306 = vmatmul.f32.gmra.mxu0 %v103
    %v307 = vpop.f32.mrf.mxu0
    %v308 = vadd.f32 %v289, %v307
    %309 = vmatmul.f32.gmra.mxu0 %v106
    %v310 = vpop.f32.mrf.mxu0
    %v311 = vadd.f32 %v289, %v310
    %312 = vdwg.mxu0
    %s313 = scalar_lea.vmem %s5, 160
    %v314 = vld [vmem:[%s313] sm:$0xff]
    %v315 = vld [vmem:[%s313 + $0x8] sm:$0xff]
    %v316 = vld [vmem:[%s313 + $0x10] sm:$0xff]
    %v317 = vld [vmem:[%s313 + $0x18] sm:$0xff]
    %v318 = vperm.slane %v283, 1
    %319 = vmatpush.msra.mxu0 0.0
    %320 = vmatpush.msra.mxu0 0.0
    %321 = vmatpush.msra.mxu0 0.0
    %322 = vmatpush.msra.mxu0 0.0
    %323 = vmatpush.msra.mxu0 0.0
    %324 = vmatpush.msra.mxu0 0.0
    %325 = vmatpush.msra.mxu0 0.0
    %326 = vmatpush.msra.mxu0 0.0
    %327 = vmatpush.msra.mxu0 0.0
    %328 = vmatpush.msra.mxu0 0.0
    %329 = vmatpush.msra.mxu0 0.0
    %330 = vmatpush.msra.mxu0 0.0
    %331 = vmatpush.msra.mxu0 %v317
    %332 = vmatpush.msra.mxu0 %v316
    %333 = vmatpush.msra.mxu0 %v315
    %334 = vmatpush.msra.mxu0 %v314
    %335 = vmatmul.f32.gmra.mxu0 %v103
    %v336 = vpop.f32.mrf.mxu0
    %v337 = vadd.f32 %v318, %v336
    %338 = vmatmul.f32.gmra.mxu0 %v106
    %v339 = vpop.f32.mrf.mxu0
    %v340 = vadd.f32 %v318, %v339
    %341 = vdwg.mxu0
    %s342 = scalar_lea.vmem %s5, 288
    %v343 = vld [vmem:[%s342] sm:$0xff]
    %v344 = vld [vmem:[%s342 + $0x8] sm:$0xff]
    %v345 = vld [vmem:[%s342 + $0x10] sm:$0xff]
    %v346 = vld [vmem:[%s342 + $0x18] sm:$0xff]
    %v347 = vperm.slane %v283, 2
    %348 = vmatpush.msra.mxu0 0.0
    %349 = vmatpush.msra.mxu0 0.0
    %350 = vmatpush.msra.mxu0 0.0
    %351 = vmatpush.msra.mxu0 0.0
    %352 = vmatpush.msra.mxu0 0.0
    %353 = vmatpush.msra.mxu0 0.0
    %354 = vmatpush.msra.mxu0 0.0
    %355 = vmatpush.msra.mxu0 0.0
    %356 = vmatpush.msra.mxu0 0.0
    %357 = vmatpush.msra.mxu0 0.0
    %358 = vmatpush.msra.mxu0 0.0
    %359 = vmatpush.msra.mxu0 0.0
    %360 = vmatpush.msra.mxu0 %v346
    %361 = vmatpush.msra.mxu0 %v345
    %362 = vmatpush.msra.mxu0 %v344
    %363 = vmatpush.msra.mxu0 %v343
    %364 = vmatmul.f32.gmra.mxu0 %v103
    %v365 = vpop.f32.mrf.mxu0
    %v366 = vadd.f32 %v347, %v365
    %367 = vmatmul.f32.gmra.mxu0 %v106
    %v368 = vpop.f32.mrf.mxu0
    %v369 = vadd.f32 %v347, %v368
    %370 = vdwg.mxu0
    %v372 = vsel %vm189, %v308, 0
    %v375 = vsel %vm189, %v311, 0
    %v378 = vsel %vm189, %v337, 0
    %v381 = vsel %vm189, %v340, 0
    %383 = vmatpush.xpose.msra.mxu0 0.0
    %384 = vmatpush.xpose.msra.mxu0 0.0
    %385 = vmatpush.xpose.msra.mxu0 0.0
    %386 = vmatpush.xpose.msra.mxu0 0.0
    %387 = vmatpush.xpose.msra.mxu0 0.0
    %388 = vmatpush.xpose.msra.mxu0 0.0
    %389 = vmatpush.xpose.msra.mxu0 0.0
    %390 = vmatpush.xpose.msra.mxu0 0.0
    %391 = vmatpush.xpose.msra.mxu0 0.0
    %392 = vmatpush.xpose.msra.mxu0 0.0
    %393 = vmatpush.xpose.msra.mxu0 0.0
    %394 = vmatpush.xpose.msra.mxu0 0.0
    %395 = vmatpush.xpose.msra.mxu0 0.0
    %396 = vmatpush.xpose.msra.mxu0 0.0
    %397 = vmatpush.xpose.msra.mxu0 %v381
    %398 = vmatpush.xpose.msra.mxu0 %v378
    %399 = vmatmul.f32.gmra.mxu0 %v372
    %v400 = vpop.f32.mrf.mxu0
    %v401 = vadd.f32 0.0, %v400
    %402 = vmatmul.f32.gmra.mxu0 %v375
    %v403 = vpop.f32.mrf.mxu0
    %v404 = vadd.f32 0.0, %v403
    %405 = vdwg.mxu0
    %v406 = vmul.f32 %v401, 0.35355338
    %v407 = vmul.f32 %v404, 0.35355338
    %v408 = vadd.f32 %v406, %v94
    %v409 = vadd.f32 %v407, %v95
    %v410 = vsel %vm229, %v408, -inf
    %411 = vmax.xlane.f32.xlu0 %v410
    %v412 = vpop.xlane.xlu0 %411
    %v413 = vsel %vm229, %v409, -inf
    %414 = vmax.xlane.f32.xlu0 %v413
    %v415 = vpop.xlane.xlu0 %414
    %v416 = vsub.f32 %v408, %v412
    %v417 = vsub.f32 %v409, %v415
    %v418 = vmul.f32 %v416, 1.442695
    %v419 = vpow.pop %v418
    %v420 = vmul.f32 %v417, 1.442695
    %v421 = vpow.pop %v420
    %v422 = vsel %vm229, %v419, 0.0
    %423 = vadd.xlane.f32.xlu0 %v422
    %v424 = vpop.xlane.xlu0 %423
    %v425 = vsel %vm229, %v421, 0.0
    %426 = vadd.xlane.f32.xlu0 %v425
    %v427 = vpop.xlane.xlu0 %426
    %v428 = vrcp.pop %v424
    %v429 = vrcp.pop %v427
    %v430 = vmul.f32 %v419, %v428
    %v431 = vmul.f32 %v421, %v429
    %v433 = vsel %vm229, %v430, 0
    %v436 = vsel %vm229, %v431, 0
    %438 = vmatpush.msra.mxu0 0.0
    %439 = vmatpush.msra.mxu0 0.0
    %440 = vmatpush.msra.mxu0 0.0
    %441 = vmatpush.msra.mxu0 0.0
    %442 = vmatpush.msra.mxu0 0.0
    %443 = vmatpush.msra.mxu0 0.0
    %444 = vmatpush.msra.mxu0 0.0
    %445 = vmatpush.msra.mxu0 0.0
    %446 = vmatpush.msra.mxu0 0.0
    %447 = vmatpush.msra.mxu0 0.0
    %448 = vmatpush.msra.mxu0 0.0
    %449 = vmatpush.msra.mxu0 0.0
    %450 = vmatpush.msra.mxu0 0.0
    %451 = vmatpush.msra.mxu0 0.0
    %452 = vmatpush.msra.mxu0 %v369
    %453 = vmatpush.msra.mxu0 %v366
    %454 = vmatmul.f32.gmra.mxu0 %v433
    %v455 = vpop.f32.mrf.mxu0
    %v456 = vadd.f32 0.0, %v455
    %457 = vmatmul.f32.gmra.mxu0 %v436
    %v458 = vpop.f32.mrf.mxu0
    %v459 = vadd.f32 0.0, %v458
    %460 = vdwg.mxu0
    %s461 = scalar_lea.vmem %s6, 8
    %v462 = vld [vmem:[%s461] sm:$0xff]
    %v464 = vsel %vm189, %v456, 0
    %v467 = vsel %vm189, %v459, 0
    %469 = vmatpush.msra.mxu0 0.0
    %470 = vmatpush.msra.mxu0 0.0
    %471 = vmatpush.msra.mxu0 0.0
    %472 = vmatpush.msra.mxu0 0.0
    %473 = vmatpush.msra.mxu0 0.0
    %474 = vmatpush.msra.mxu0 0.0
    %475 = vmatpush.msra.mxu0 0.0
    %476 = vmatpush.msra.mxu0 0.0
    %477 = vmatpush.msra.mxu0 0.0
    %478 = vmatpush.msra.mxu0 0.0
    %479 = vmatpush.msra.mxu0 0.0
    %480 = vmatpush.msra.mxu0 0.0
    %481 = vmatpush.msra.mxu0 0.0
    %482 = vmatpush.msra.mxu0 0.0
    %483 = vmatpush.msra.mxu0 0.0
    %484 = vmatpush.msra.mxu0 %v462
    %485 = vmatmul.f32.gmra.mxu0 %v464
    %v486 = vpop.f32.mrf.mxu0
    %v487 = vadd.f32 0.0, %v486
    %488 = vmatmul.f32.gmra.mxu0 %v467
    %v489 = vpop.f32.mrf.mxu0
    %v490 = vadd.f32 0.0, %v489
    %491 = vdwg.mxu0
    %v493 = vsel %vm189, %v276, 0
    %v496 = vsel %vm189, %v279, 0
    %498 = vmatpush.msra.mxu0 0.0
    %499 = vmatpush.msra.mxu0 0.0
    %500 = vmatpush.msra.mxu0 0.0
    %501 = vmatpush.msra.mxu0 0.0
    %502 = vmatpush.msra.mxu0 0.0
    %503 = vmatpush.msra.mxu0 0.0
    %504 = vmatpush.msra.mxu0 0.0
    %505 = vmatpush.msra.mxu0 0.0
    %506 = vmatpush.msra.mxu0 0.0
    %507 = vmatpush.msra.mxu0 0.0
    %508 = vmatpush.msra.mxu0 0.0
    %509 = vmatpush.msra.mxu0 0.0
    %510 = vmatpush.msra.mxu0 0.0
    %511 = vmatpush.msra.mxu0 0.0
    %512 = vmatpush.msra.mxu0 0.0
    %513 = vmatpush.msra.mxu0 %v281
    %514 = vmatmul.f32.gmra.mxu0 %v493
    %v515 = vpop.f32.mrf.mxu0
    %v516 = vadd.f32 %v487, %v515
    %517 = vmatmul.f32.gmra.mxu0 %v496
    %v518 = vpop.f32.mrf.mxu0
    %v519 = vadd.f32 %v490, %v518
    %520 = vdwg.mxu0
    %s521 = scalar_lea.vmem %s2, 8
    %v522 = vld [vmem:[%s521] sm:$0x7]
    %s523 = scalar_lea.vmem %s5, 64
    %v524 = vld [vmem:[%s523] sm:$0xff]
    %v525 = vld [vmem:[%s523 + $0x8] sm:$0xff]
    %v526 = vld [vmem:[%s523 + $0x10] sm:$0xff]
    %v527 = vld [vmem:[%s523 + $0x18] sm:$0xff]
    %v528 = vperm.slane %v522, 0
    %529 = vmatpush.msra.mxu0 0.0
    %530 = vmatpush.msra.mxu0 0.0
    %531 = vmatpush.msra.mxu0 0.0
    %532 = vmatpush.msra.mxu0 0.0
    %533 = vmatpush.msra.mxu0 0.0
    %534 = vmatpush.msra.mxu0 0.0
    %535 = vmatpush.msra.mxu0 0.0
    %536 = vmatpush.msra.mxu0 0.0
    %537 = vmatpush.msra.mxu0 0.0
    %538 = vmatpush.msra.mxu0 0.0
    %539 = vmatpush.msra.mxu0 0.0
    %540 = vmatpush.msra.mxu0 0.0
    %541 = vmatpush.msra.mxu0 %v527
    %542 = vmatpush.msra.mxu0 %v526
    %543 = vmatpush.msra.mxu0 %v525
    %544 = vmatpush.msra.mxu0 %v524
    %545 = vmatmul.f32.gmra.mxu0 %v103
    %v546 = vpop.f32.mrf.mxu0
    %v547 = vadd.f32 %v528, %v546
    %548 = vmatmul.f32.gmra.mxu0 %v106
    %v549 = vpop.f32.mrf.mxu0
    %v550 = vadd.f32 %v528, %v549
    %551 = vdwg.mxu0
    %s552 = scalar_lea.vmem %s5, 192
    %v553 = vld [vmem:[%s552] sm:$0xff]
    %v554 = vld [vmem:[%s552 + $0x8] sm:$0xff]
    %v555 = vld [vmem:[%s552 + $0x10] sm:$0xff]
    %v556 = vld [vmem:[%s552 + $0x18] sm:$0xff]
    %v557 = vperm.slane %v522, 1
    %558 = vmatpush.msra.mxu0 0.0
    %559 = vmatpush.msra.mxu0 0.0
    %560 = vmatpush.msra.mxu0 0.0
    %561 = vmatpush.msra.mxu0 0.0
    %562 = vmatpush.msra.mxu0 0.0
    %563 = vmatpush.msra.mxu0 0.0
    %564 = vmatpush.msra.mxu0 0.0
    %565 = vmatpush.msra.mxu0 0.0
    %566 = vmatpush.msra.mxu0 0.0
    %567 = vmatpush.msra.mxu0 0.0
    %568 = vmatpush.msra.mxu0 0.0
    %569 = vmatpush.msra.mxu0 0.0
    %570 = vmatpush.msra.mxu0 %v556
    %571 = vmatpush.msra.mxu0 %v555
    %572 = vmatpush.msra.mxu0 %v554
    %573 = vmatpush.msra.mxu0 %v553
    %574 = vmatmul.f32.gmra.mxu0 %v103
    %v575 = vpop.f32.mrf.mxu0
    %v576 = vadd.f32 %v557, %v575
    %577 = vmatmul.f32.gmra.mxu0 %v106
    %v578 = vpop.f32.mrf.mxu0
    %v579 = vadd.f32 %v557, %v578
    %580 = vdwg.mxu0
    %s581 = scalar_lea.vmem %s5, 320
    %v582 = vld [vmem:[%s581] sm:$0xff]
    %v583 = vld [vmem:[%s581 + $0x8] sm:$0xff]
    %v584 = vld [vmem:[%s581 + $0x10] sm:$0xff]
    %v585 = vld [vmem:[%s581 + $0x18] sm:$0xff]
    %v586 = vperm.slane %v522, 2
    %587 = vmatpush.msra.mxu0 0.0
    %588 = vmatpush.msra.mxu0 0.0
    %589 = vmatpush.msra.mxu0 0.0
    %590 = vmatpush.msra.mxu0 0.0
    %591 = vmatpush.msra.mxu0 0.0
    %592 = vmatpush.msra.mxu0 0.0
    %593 = vmatpush.msra.mxu0 0.0
    %594 = vmatpush.msra.mxu0 0.0
    %595 = vmatpush.msra.mxu0 0.0
    %596 = vmatpush.msra.mxu0 0.0
    %597 = vmatpush.msra.mxu0 0.0
    %598 = vmatpush.msra.mxu0 0.0
    %599 = vmatpush.msra.mxu0 %v585
    %600 = vmatpush.msra.mxu0 %v584
    %601 = vmatpush.msra.mxu0 %v583
    %602 = vmatpush.msra.mxu0 %v582
    %603 = vmatmul.f32.gmra.mxu0 %v103
    %v604 = vpop.f32.mrf.mxu0
    %v605 = vadd.f32 %v586, %v604
    %606 = vmatmul.f32.gmra.mxu0 %v106
    %v607 = vpop.f32.mrf.mxu0
    %v608 = vadd.f32 %v586, %v607
    %609 = vdwg.mxu0
    %v611 = vsel %vm189, %v547, 0
    %v614 = vsel %vm189, %v550, 0
    %v617 = vsel %vm189, %v576, 0
    %v620 = vsel %vm189, %v579, 0
    %622 = vmatpush.xpose.msra.mxu0 0.0
    %623 = vmatpush.xpose.msra.mxu0 0.0
    %624 = vmatpush.xpose.msra.mxu0 0.0
    %625 = vmatpush.xpose.msra.mxu0 0.0
    %626 = vmatpush.xpose.msra.mxu0 0.0
    %627 = vmatpush.xpose.msra.mxu0 0.0
    %628 = vmatpush.xpose.msra.mxu0 0.0
    %629 = vmatpush.xpose.msra.mxu0 0.0
    %630 = vmatpush.xpose.msra.mxu0 0.0
    %631 = vmatpush.xpose.msra.mxu0 0.0
    %632 = vmatpush.xpose.msra.mxu0 0.0
    %633 = vmatpush.xpose.msra.mxu0 0.0
    %634 = vmatpush.xpose.msra.mxu0 0.0
    %635 = vmatpush.xpose.msra.mxu0 0.0
    %636 = vmatpush.xpose.msra.mxu0 %v620
    %637 = vmatpush.xpose.msra.mxu0 %v617
    %638 = vmatmul.f32.gmra.mxu0 %v611
    %v639 = vpop.f32.mrf.mxu0
    %v640 = vadd.f32 0.0, %v639
    %641 = vmatmul.f32.gmra.mxu0 %v614
    %v642 = vpop.f32.mrf.mxu0
    %v643 = vadd.f32 0.0, %v642
    %644 = vdwg.mxu0
    %v645 = vmul.f32 %v640, 0.35355338
    %v646 = vmul.f32 %v643, 0.35355338
    %v647 = vadd.f32 %v645, %v94
    %v648 = vadd.f32 %v646, %v95
    %v649 = vsel %vm229, %v647, -inf
    %650 = vmax.xlane.f32.xlu0 %v649
    %v651 = vpop.xlane.xlu0 %650
    %v652 = vsel %vm229, %v648, -inf
    %653 = vmax.xlane.f32.xlu0 %v652
    %v654 = vpop.xlane.xlu0 %653
    %v655 = vsub.f32 %v647, %v651
    %v656 = vsub.f32 %v648, %v654
    %v657 = vmul.f32 %v655, 1.442695
    %v658 = vpow.pop %v657
    %v659 = vmul.f32 %v656, 1.442695
    %v660 = vpow.pop %v659
    %v661 = vsel %vm229, %v658, 0.0
    %662 = vadd.xlane.f32.xlu0 %v661
    %v663 = vpop.xlane.xlu0 %662
    %v664 = vsel %vm229, %v660, 0.0
    %665 = vadd.xlane.f32.xlu0 %v664
    %v666 = vpop.xlane.xlu0 %665
    %v667 = vrcp.pop %v663
    %v668 = vrcp.pop %v666
    %v669 = vmul.f32 %v658, %v667
    %v670 = vmul.f32 %v660, %v668
    %v672 = vsel %vm229, %v669, 0
    %v675 = vsel %vm229, %v670, 0
    %677 = vmatpush.msra.mxu0 0.0
    %678 = vmatpush.msra.mxu0 0.0
    %679 = vmatpush.msra.mxu0 0.0
    %680 = vmatpush.msra.mxu0 0.0
    %681 = vmatpush.msra.mxu0 0.0
    %682 = vmatpush.msra.mxu0 0.0
    %683 = vmatpush.msra.mxu0 0.0
    %684 = vmatpush.msra.mxu0 0.0
    %685 = vmatpush.msra.mxu0 0.0
    %686 = vmatpush.msra.mxu0 0.0
    %687 = vmatpush.msra.mxu0 0.0
    %688 = vmatpush.msra.mxu0 0.0
    %689 = vmatpush.msra.mxu0 0.0
    %690 = vmatpush.msra.mxu0 0.0
    %691 = vmatpush.msra.mxu0 %v608
    %692 = vmatpush.msra.mxu0 %v605
    %693 = vmatmul.f32.gmra.mxu0 %v672
    %v694 = vpop.f32.mrf.mxu0
    %v695 = vadd.f32 0.0, %v694
    %696 = vmatmul.f32.gmra.mxu0 %v675
    %v697 = vpop.f32.mrf.mxu0
    %v698 = vadd.f32 0.0, %v697
    %699 = vdwg.mxu0
    %s700 = scalar_lea.vmem %s6, 16
    %v701 = vld [vmem:[%s700] sm:$0xff]
    %v703 = vsel %vm189, %v695, 0
    %v706 = vsel %vm189, %v698, 0
    %708 = vmatpush.msra.mxu0 0.0
    %709 = vmatpush.msra.mxu0 0.0
    %710 = vmatpush.msra.mxu0 0.0
    %711 = vmatpush.msra.mxu0 0.0
    %712 = vmatpush.msra.mxu0 0.0
    %713 = vmatpush.msra.mxu0 0.0
    %714 = vmatpush.msra.mxu0 0.0
    %715 = vmatpush.msra.mxu0 0.0
    %716 = vmatpush.msra.mxu0 0.0
    %717 = vmatpush.msra.mxu0 0.0
    %718 = vmatpush.msra.mxu0 0.0
    %719 = vmatpush.msra.mxu0 0.0
    %720 = vmatpush.msra.mxu0 0.0
    %721 = vmatpush.msra.mxu0 0.0
    %722 = vmatpush.msra.mxu0 0.0
    %723 = vmatpush.msra.mxu0 %v701
    %724 = vmatmul.f32.gmra.mxu0 %v703
    %v725 = vpop.f32.mrf.mxu0
    %v726 = vadd.f32 0.0, %v725
    %727 = vmatmul.f32.gmra.mxu0 %v706
    %v728 = vpop.f32.mrf.mxu0
    %v729 = vadd.f32 0.0, %v728
    %730 = vdwg.mxu0
    %v731 = vadd.f32 %v516, %v726
    %v732 = vadd.f32 %v519, %v729
    %s733 = scalar_lea.vmem %s2, 12
    %v734 = vld [vmem:[%s733] sm:$0x7]
    %s735 = scalar_lea.vmem %s5, 96
    %v736 = vld [vmem:[%s735] sm:$0xff]
    %v737 = vld [vmem:[%s735 + $0x8] sm:$0xff]
    %v738 = vld [vmem:[%s735 + $0x10] sm:$0xff]
    %v739 = vld [vmem:[%s735 + $0x18] sm:$0xff]
    %v740 = vperm.slane %v734, 0
    %741 = vmatpush.msra.mxu0 0.0
    %742 = vmatpush.msra.mxu0 0.0
    %743 = vmatpush.msra.mxu0 0.0
    %744 = vmatpush.msra.mxu0 0.0
    %745 = vmatpush.msra.mxu0 0.0
    %746 = vmatpush.msra.mxu0 0.0
    %747 = vmatpush.msra.mxu0 0.0
    %748 = vmatpush.msra.mxu0 0.0
    %749 = vmatpush.msra.mxu0 0.0
    %750 = vmatpush.msra.mxu0 0.0
    %751 = vmatpush.msra.mxu0 0.0
    %752 = vmatpush.msra.mxu0 0.0
    %753 = vmatpush.msra.mxu0 %v739
    %754 = vmatpush.msra.mxu0 %v738
    %755 = vmatpush.msra.mxu0 %v737
    %756 = vmatpush.msra.mxu0 %v736
    %757 = vmatmul.f32.gmra.mxu0 %v103
    %v758 = vpop.f32.mrf.mxu0
    %v759 = vadd.f32 %v740, %v758
    %760 = vmatmul.f32.gmra.mxu0 %v106
    %v761 = vpop.f32.mrf.mxu0
    %v762 = vadd.f32 %v740, %v761
    %763 = vdwg.mxu0
    %s764 = scalar_lea.vmem %s5, 224
    %v765 = vld [vmem:[%s764] sm:$0xff]
    %v766 = vld [vmem:[%s764 + $0x8] sm:$0xff]
    %v767 = vld [vmem:[%s764 + $0x10] sm:$0xff]
    %v768 = vld [vmem:[%s764 + $0x18] sm:$0xff]
    %v769 = vperm.slane %v734, 1
    %770 = vmatpush.msra.mxu0 0.0
    %771 = vmatpush.msra.mxu0 0.0
    %772 = vmatpush.msra.mxu0 0.0
    %773 = vmatpush.msra.mxu0 0.0
    %774 = vmatpush.msra.mxu0 0.0
    %775 = vmatpush.msra.mxu0 0.0
    %776 = vmatpush.msra.mxu0 0.0
    %777 = vmatpush.msra.mxu0 0.0
    %778 = vmatpush.msra.mxu0 0.0
    %779 = vmatpush.msra.mxu0 0.0
    %780 = vmatpush.msra.mxu0 0.0
    %781 = vmatpush.msra.mxu0 0.0
    %782 = vmatpush.msra.mxu0 %v768
    %783 = vmatpush.msra.mxu0 %v767
    %784 = vmatpush.msra.mxu0 %v766
    %785 = vmatpush.msra.mxu0 %v765
    %786 = vmatmul.f32.gmra.mxu0 %v103
    %v787 = vpop.f32.mrf.mxu0
    %v788 = vadd.f32 %v769, %v787
    %789 = vmatmul.f32.gmra.mxu0 %v106
    %v790 = vpop.f32.mrf.mxu0
    %v791 = vadd.f32 %v769, %v790
    %792 = vdwg.mxu0
    %s793 = scalar_lea.vmem %s5, 352
    %v794 = vld [vmem:[%s793] sm:$0xff]
    %v795 = vld [vmem:[%s793 + $0x8] sm:$0xff]
    %v796 = vld [vmem:[%s793 + $0x10] sm:$0xff]
    %v797 = vld [vmem:[%s793 + $0x18] sm:$0xff]
    %v798 = vperm.slane %v734, 2
    %799 = vmatpush.msra.mxu0 0.0
    %800 = vmatpush.msra.mxu0 0.0
    %801 = vmatpush.msra.mxu0 0.0
    %802 = vmatpush.msra.mxu0 0.0
    %803 = vmatpush.msra.mxu0 0.0
    %804 = vmatpush.msra.mxu0 0.0
    %805 = vmatpush.msra.mxu0 0.0
    %806 = vmatpush.msra.mxu0 0.0
    %807 = vmatpush.msra.mxu0 0.0
    %808 = vmatpush.msra.mxu0 0.0
    %809 = vmatpush.msra.mxu0 0.0
    %810 = vmatpush.msra.mxu0 0.0
    %811 = vmatpush.msra.mxu0 %v797
    %812 = vmatpush.msra.mxu0 %v796
    %813 = vmatpush.msra.mxu0 %v795
    %814 = vmatpush.msra.mxu0 %v794
    %815 = vmatmul.f32.gmra.mxu0 %v103
    %v816 = vpop.f32.mrf.mxu0
    %v817 = vadd.f32 %v798, %v816
    %818 = vmatmul.f32.gmra.mxu0 %v106
    %v819 = vpop.f32.mrf.mxu0
    %v820 = vadd.f32 %v798, %v819
    %821 = vdwg.mxu0
    %v823 = vsel %vm189, %v759, 0
    %v826 = vsel %vm189, %v762, 0
    %v829 = vsel %vm189, %v788, 0
    %v832 = vsel %vm189, %v791, 0
    %834 = vmatpush.xpose.msra.mxu0 0.0
    %835 = vmatpush.xpose.msra.mxu0 0.0
    %836 = vmatpush.xpose.msra.mxu0 0.0
    %837 = vmatpush.xpose.msra.mxu0 0.0
    %838 = vmatpush.xpose.msra.mxu0 0.0
    %839 = vmatpush.xpose.msra.mxu0 0.0
    %840 = vmatpush.xpose.msra.mxu0 0.0
    %841 = vmatpush.xpose.msra.mxu0 0.0
    %842 = vmatpush.xpose.msra.mxu0 0.0
    %843 = vmatpush.xpose.msra.mxu0 0.0
    %844 = vmatpush.xpose.msra.mxu0 0.0
    %845 = vmatpush.xpose.msra.mxu0 0.0
    %846 = vmatpush.xpose.msra.mxu0 0.0
    %847 = vmatpush.xpose.msra.mxu0 0.0
    %848 = vmatpush.xpose.msra.mxu0 %v832
    %849 = vmatpush.xpose.msra.mxu0 %v829
    %850 = vmatmul.f32.gmra.mxu0 %v823
    %v851 = vpop.f32.mrf.mxu0
    %v852 = vadd.f32 0.0, %v851
    %853 = vmatmul.f32.gmra.mxu0 %v826
    %v854 = vpop.f32.mrf.mxu0
    %v855 = vadd.f32 0.0, %v854
    %856 = vdwg.mxu0
    %v857 = vmul.f32 %v852, 0.35355338
    %v858 = vmul.f32 %v855, 0.35355338
    %v859 = vadd.f32 %v857, %v94
    %v860 = vadd.f32 %v858, %v95
    %v861 = vsel %vm229, %v859, -inf
    %862 = vmax.xlane.f32.xlu0 %v861
    %v863 = vpop.xlane.xlu0 %862
    %v864 = vsel %vm229, %v860, -inf
    %865 = vmax.xlane.f32.xlu0 %v864
    %v866 = vpop.xlane.xlu0 %865
    %v867 = vsub.f32 %v859, %v863
    %v868 = vsub.f32 %v860, %v866
    %v869 = vmul.f32 %v867, 1.442695
    %v870 = vpow.pop %v869
    %v871 = vmul.f32 %v868, 1.442695
    %v872 = vpow.pop %v871
    %v873 = vsel %vm229, %v870, 0.0
    %874 = vadd.xlane.f32.xlu0 %v873
    %v875 = vpop.xlane.xlu0 %874
    %v876 = vsel %vm229, %v872, 0.0
    %877 = vadd.xlane.f32.xlu0 %v876
    %v878 = vpop.xlane.xlu0 %877
    %v879 = vrcp.pop %v875
    %v880 = vrcp.pop %v878
    %v881 = vmul.f32 %v870, %v879
    %v882 = vmul.f32 %v872, %v880
    %v884 = vsel %vm229, %v881, 0
    %v887 = vsel %vm229, %v882, 0
    %889 = vmatpush.msra.mxu0 0.0
    %890 = vmatpush.msra.mxu0 0.0
    %891 = vmatpush.msra.mxu0 0.0
    %892 = vmatpush.msra.mxu0 0.0
    %893 = vmatpush.msra.mxu0 0.0
    %894 = vmatpush.msra.mxu0 0.0
    %895 = vmatpush.msra.mxu0 0.0
    %896 = vmatpush.msra.mxu0 0.0
    %897 = vmatpush.msra.mxu0 0.0
    %898 = vmatpush.msra.mxu0 0.0
    %899 = vmatpush.msra.mxu0 0.0
    %900 = vmatpush.msra.mxu0 0.0
    %901 = vmatpush.msra.mxu0 0.0
    %902 = vmatpush.msra.mxu0 0.0
    %903 = vmatpush.msra.mxu0 %v820
    %904 = vmatpush.msra.mxu0 %v817
    %905 = vmatmul.f32.gmra.mxu0 %v884
    %v906 = vpop.f32.mrf.mxu0
    %v907 = vadd.f32 0.0, %v906
    %908 = vmatmul.f32.gmra.mxu0 %v887
    %v909 = vpop.f32.mrf.mxu0
    %v910 = vadd.f32 0.0, %v909
    %911 = vdwg.mxu0
    %s912 = scalar_lea.vmem %s6, 24
    %v913 = vld [vmem:[%s912] sm:$0xff]
    %v915 = vsel %vm189, %v907, 0
    %v918 = vsel %vm189, %v910, 0
    %920 = vmatpush.msra.mxu0 0.0
    %921 = vmatpush.msra.mxu0 0.0
    %922 = vmatpush.msra.mxu0 0.0
    %923 = vmatpush.msra.mxu0 0.0
    %924 = vmatpush.msra.mxu0 0.0
    %925 = vmatpush.msra.mxu0 0.0
    %926 = vmatpush.msra.mxu0 0.0
    %927 = vmatpush.msra.mxu0 0.0
    %928 = vmatpush.msra.mxu0 0.0
    %929 = vmatpush.msra.mxu0 0.0
    %930 = vmatpush.msra.mxu0 0.0
    %931 = vmatpush.msra.mxu0 0.0
    %932 = vmatpush.msra.mxu0 0.0
    %933 = vmatpush.msra.mxu0 0.0
    %934 = vmatpush.msra.mxu0 0.0
    %935 = vmatpush.msra.mxu0 %v913
    %936 = vmatmul.f32.gmra.mxu0 %v915
    %v937 = vpop.f32.mrf.mxu0
    %v938 = vadd.f32 0.0, %v937
    %939 = vmatmul.f32.gmra.mxu0 %v918
    %v940 = vpop.f32.mrf.mxu0
    %v941 = vadd.f32 0.0, %v940
    %942 = vdwg.mxu0
    %v943 = vadd.f32 %v731, %v938
    %v944 = vadd.f32 %v732, %v941
    %v945 = vperm.slane %v35, 4
    %v946 = vadd.f32 %v943, %v945
    %v947 = vadd.f32 %v944, %v945
    %v948 = vadd.f32 %v33, %v946
    %v949 = vadd.f32 %v34, %v947
    %v950 = vsel %vm36, %v948, 0.0
    %951 = vadd.xlane.f32.xlu0 %v950
    %v952 = vpop.xlane.xlu0 %951
    %v953 = vsel %vm36, %v949, 0.0
    %954 = vadd.xlane.f32.xlu0 %v953
    %v955 = vpop.xlane.xlu0 %954
    %v956 = vmul.f32 %v952, %v49
    %v957 = vmul.f32 %v955, %v49
    %v958 = vsub.f32 %v948, %v956
    %v959 = vsub.f32 %v949, %v957
    %v960 = vmul.f32 %v958, %v958
    %v961 = vmul.f32 %v959, %v959
    %v962 = vsel %vm36, %v960, 0.0
    %963 = vadd.xlane.f32.xlu0 %v962
    %v964 = vpop.xlane.xlu0 %963
    %v965 = vsel %vm36, %v961, 0.0
    %966 = vadd.xlane.f32.xlu0 %v965
    %v967 = vpop.xlane.xlu0 %966
    %v968 = vmul.f32 %v964, %v49
    %v969 = vmul.f32 %v967, %v49
    %v970 = vadd.f32 %v968, 1e-05
    %v971 = vadd.f32 %v969, 1e-05
    %v972 = vrsqrt.pop %v970
    %v973 = vmul.f32 %v972, %v970
    %v974 = vmul.f32 %v973, %v972
    %v975 = vmul.f32 0.5, %v974
    %v976 = vsub.f32 1.5, %v975
    %v977 = vmul.f32 %v972, %v976
    %vm978 = vweird.f32 %v970
    %vm979 = vweird.f32 %v972
    %vm980 = vmor %vm978, %vm979
    %v981 = vsel %vm980, %v972, %v977
    %v982 = vrsqrt.pop %v971
    %v983 = vmul.f32 %v982, %v971
    %v984 = vmul.f32 %v983, %v982
    %v985 = vmul.f32 0.5, %v984
    %v986 = vsub.f32 1.5, %v985
    %v987 = vmul.f32 %v982, %v986
    %vm988 = vweird.f32 %v971
    %vm989 = vweird.f32 %v982
    %vm990 = vmor %vm988, %vm989
    %v991 = vsel %vm990, %v982, %v987
    %v992 = vmul.f32 %v958, %v981
    %v993 = vmul.f32 %v959, %v991
    %v994 = vperm.slane %v35, 2
    %v995 = vmul.f32 %v992, %v994
    %v996 = vmul.f32 %v993, %v994
    %v997 = vperm.slane %v35, 3
    %v998 = vadd.f32 %v995, %v997
    %v999 = vadd.f32 %v996, %v997
    %v1000 = vld [vmem:[%s7] sm:$0xff]
    %v1001 = vld [vmem:[%s7 + $0x8] sm:$0xff]
    %v1002 = vld [vmem:[%s7 + $0x10] sm:$0xff]
    %v1003 = vld [vmem:[%s7 + $0x18] sm:$0xff]
    %v1004 = vld [vmem:[%s3] sm:$0x1]
    %v1006 = vperm.slane %v1004, 0
    %v1009 = vsel %vm36, %v998, 0
    %v1012 = vsel %vm36, %v999, 0
    %1014 = vmatpush.msra.mxu0 0.0
    %1015 = vmatpush.msra.mxu0 0.0
    %1016 = vmatpush.msra.mxu0 0.0
    %1017 = vmatpush.msra.mxu0 0.0
    %1018 = vmatpush.msra.mxu0 0.0
    %1019 = vmatpush.msra.mxu0 0.0
    %1020 = vmatpush.msra.mxu0 0.0
    %1021 = vmatpush.msra.mxu0 0.0
    %1022 = vmatpush.msra.mxu0 0.0
    %1023 = vmatpush.msra.mxu0 0.0
    %1024 = vmatpush.msra.mxu0 0.0
    %1025 = vmatpush.msra.mxu0 0.0
    %1026 = vmatpush.msra.mxu0 %v1003
    %1027 = vmatpush.msra.mxu0 %v1002
    %1028 = vmatpush.msra.mxu0 %v1001
    %1029 = vmatpush.msra.mxu0 %v1000
    %1030 = vmatmul.f32.gmra.mxu0 %v1009
    %v1031 = vpop.f32.mrf.mxu0
    %v1032 = vadd.f32 %v1006, %v1031
    %1033 = vmatmul.f32.gmra.mxu0 %v1012
    %v1034 = vpop.f32.mrf.mxu0
    %v1035 = vadd.f32 %v1006, %v1034
    %1036 = vdwg.mxu0
    %v1037 = vmul.f32 %v1032, 0.5
    %v1038 = vmul.f32 %v1035, 0.5
    %v1039 = vmul.f32 %v1032, 0.70710677
    %v1040 = vmul.f32 %v1035, 0.70710677
    %v1041 = vmul.f32 %v1039, %v1039
    %v1042 = vmin.f32 16.0, %v1041
    %v1043 = vmul.f32 %v1042, 2.1237322e-06
    %v1044 = vadd.f32 %v1043, 0.00028619796
    %v1045 = vmul.f32 %v1042, %v1044
    %v1046 = vadd.f32 %v1045, 0.0036580483
    %v1047 = vmul.f32 %v1042, %v1046
    %v1048 = vadd.f32 %v1047, 0.05243302
    %v1049 = vmul.f32 %v1042, %v1048
    %v1050 = vadd.f32 %v1049, 0.18741608
    %v1051 = vmul.f32 %v1042, %v1050
    %v1052 = vadd.f32 %v1051, 1.1283791
    %v1053 = vmul.f32 %v1039, %v1052
    %v1054 = vmul.f32 %v1042, 3.8918573e-05
    %v1055 = vadd.f32 %v1054, 0.001143296
    %v1056 = vmul.f32 %v1042, %v1055
    %v1057 = vadd.f32 %v1056, 0.014752088
    %v1058 = vmul.f32 %v1042, %v1057
    %v1059 = vadd.f32 %v1058, 0.112945676
    %v1060 = vmul.f32 %v1042, %v1059
    %v1061 = vadd.f32 %v1060, 0.4994258
    %v1062 = vmul.f32 %v1042, %v1061
    %v1063 = vadd.f32 %v1062, 1.0
    %v1064 = vrcp.pop %v1063
    %v1065 = vmul.f32 %v1063, %v1064
    %v1066 = vsub.f32 1.0, %v1065
    %v1067 = vmul.f32 %v1064, %v1066
    %v1068 = vadd.f32 %v1064, %v1067
    %vm1069 = vweird.f32 %v1063
    %vm1070 = vweird.f32 %v1064
    %vm1071 = vmor %vm1069, %vm1070
    %v1072 = vsel %vm1071, %v1064, %v1068
    %v1073 = vand.u32 2147483647, %v1063
    %vm1074 = vcmp.eq.f32.partialorder %v1073, 8.507059e+37
    %v1075 = vand.u32 %v1063, 2147483648
    %v1076 = vor.u32 1.1754944e-38, %v1075
    %v1077 = vsel %vm1074, %v1076, %v1072
    %v1078 = vmul.f32 %v1053, %v1077
    %v1079 = vmin.f32 %v1078, 1.0
    %v1080 = vmax.f32 %v1079, -1.0
    %v1081 = vmul.f32 %v1040, %v1040
    %v1082 = vmin.f32 16.0, %v1081
    %v1083 = vmul.f32 %v1082, 2.1237322e-06
    %v1084 = vadd.f32 %v1083, 0.00028619796
    %v1085 = vmul.f32 %v1082, %v1084
    %v1086 = vadd.f32 %v1085, 0.0036580483
    %v1087 = vmul.f32 %v1082, %v1086
    %v1088 = vadd.f32 %v1087, 0.05243302
    %v1089 = vmul.f32 %v1082, %v1088
    %v1090 = vadd.f32 %v1089, 0.18741608
    %v1091 = vmul.f32 %v1082, %v1090
    %v1092 = vadd.f32 %v1091, 1.1283791
    %v1093 = vmul.f32 %v1040, %v1092
    %v1094 = vmul.f32 %v1082, 3.8918573e-05
    %v1095 = vadd.f32 %v1094, 0.001143296
    %v1096 = vmul.f32 %v1082, %v1095
    %v1097 = vadd.f32 %v1096, 0.014752088
    %v1098 = vmul.f32 %v1082, %v1097
    %v1099 = vadd.f32 %v1098, 0.112945676
    %v1100 = vmul.f32 %v1082, %v1099
    %v1101 = vadd.f32 %v1100, 0.4994258
    %v1102 = vmul.f32 %v1082, %v1101
    %v1103 = vadd.f32 %v1102, 1.0
    %v1104 = vrcp.pop %v1103
    %v1105 = vmul.f32 %v1103, %v1104
    %v1106 = vsub.f32 1.0, %v1105
    %v1107 = vmul.f32 %v1104, %v1106
    %v1108 = vadd.f32 %v1104, %v1107
    %vm1109 = vweird.f32 %v1103
    %vm1110 = vweird.f32 %v1104
    %vm1111 = vmor %vm1109, %vm1110
    %v1112 = vsel %vm1111, %v1104, %v1108
    %v1113 = vand.u32 2147483647, %v1103
    %vm1114 = vcmp.eq.f32.partialorder %v1113, 8.507059e+37
    %v1115 = vand.u32 %v1103, 2147483648
    %v1116 = vor.u32 1.1754944e-38, %v1115
    %v1117 = vsel %vm1114, %v1116, %v1112
    %v1118 = vmul.f32 %v1093, %v1117
    %v1119 = vmin.f32 %v1118, 1.0
    %v1120 = vmax.f32 %v1119, -1.0
    %v1121 = vadd.f32 %v1080, 1.0
    %v1122 = vadd.f32 %v1120, 1.0
    %v1123 = vmul.f32 %v1037, %v1121
    %v1124 = vmul.f32 %v1038, %v1122
    %v1125 = vld [vmem:[%s8] sm:$0xff]
    %v1126 = vld [vmem:[%s8 + $0x8] sm:$0xff]
    %v1127 = vld [vmem:[%s8 + $0x10] sm:$0xff]
    %v1128 = vld [vmem:[%s8 + $0x18] sm:$0xff]
    %v1129 = vld [vmem:[%s8 + $0x20] sm:$0xff]
    %v1130 = vld [vmem:[%s8 + $0x28] sm:$0xff]
    %v1131 = vld [vmem:[%s8 + $0x30] sm:$0xff]
    %v1132 = vld [vmem:[%s8 + $0x38] sm:$0xff]
    %v1133 = vld [vmem:[%s8 + $0x40] sm:$0xff]
    %v1134 = vld [vmem:[%s8 + $0x48] sm:$0xff]
    %v1135 = vld [vmem:[%s8 + $0x50] sm:$0xff]
    %v1136 = vld [vmem:[%s8 + $0x58] sm:$0xff]
    %v1137 = vld [vmem:[%s8 + $0x60] sm:$0xff]
    %v1138 = vld [vmem:[%s8 + $0x68] sm:$0xff]
    %v1139 = vld [vmem:[%s8 + $0x70] sm:$0xff]
    %v1140 = vld [vmem:[%s8 + $0x78] sm:$0xff]
    %v1141 = vperm.slane %v35, 5
    %1142 = vmatpush.msra.mxu0 %v1140
    %1143 = vmatpush.msra.mxu0 %v1139
    %1144 = vmatpush.msra.mxu0 %v1138
    %1145 = vmatpush.msra.mxu0 %v1137
    %1146 = vmatpush.msra.mxu0 %v1136
    %1147 = vmatpush.msra.mxu0 %v1135
    %1148 = vmatpush.msra.mxu0 %v1134
    %1149 = vmatpush.msra.mxu0 %v1133
    %1150 = vmatpush.msra.mxu0 %v1132
    %1151 = vmatpush.msra.mxu0 %v1131
    %1152 = vmatpush.msra.mxu0 %v1130
    %1153 = vmatpush.msra.mxu0 %v1129
    %1154 = vmatpush.msra.mxu0 %v1128
    %1155 = vmatpush.msra.mxu0 %v1127
    %1156 = vmatpush.msra.mxu0 %v1126
    %1157 = vmatpush.msra.mxu0 %v1125
    %1158 = vmatmul.f32.gmra.mxu0 %v1123
    %v1159 = vpop.f32.mrf.mxu0
    %v1160 = vadd.f32 %v1141, %v1159
    %1161 = vmatmul.f32.gmra.mxu0 %v1124
    %v1162 = vpop.f32.mrf.mxu0
    %v1163 = vadd.f32 %v1141, %v1162
    %1164 = vdwg.mxu0
    %v1165 = vadd.f32 %v948, %v1160
    %v1166 = vadd.f32 %v949, %v1163
    %1167 = vst.msk [vmem:[#allocation2] sm:$0xff] %vm36, %v1165
    %1168 = vst.msk [vmem:[#allocation2 + $0x8] sm:$0xff] %vm36, %v1166
    // Predicated region
    $region38: #{block_forward.1} parent=1 // pred_check
      _
    $region39: #{block_forward.1} parent=1 // pred_check_branch
      %1170 = sbr.rel (0) target = $region41
    $region40: #{block_forward.1} parent=1 // pred_region
      %1172 = vsyncadd [#allocation3], 0
      %s1173 = sshll.u32 [#allocation2], 4
      %s1174 = int_to_ptr.vmem [resolvable:$true] %s1173
      %s1175 = sshll.u32 %s9, 4
      %s1176 = int_to_ptr.hbm [resolvable:$true] %s1175
      %1181 = dma.vmem_to_hbm [thread:$0]  %s1174, 256, %s1176, [#allocation3], 128, 128, 8
    $region41: #{block_forward.1} parent=1 // pred_fallthru
      _
    // Predicated region
    $region42: #{block_forward.1} parent=1 // pred_check
      _
    $region43: #{block_forward.1} parent=1 // pred_check_branch
      %1183 = sbr.rel (0) target = $region45
    $region44: #{block_forward.1} parent=1 // pred_region
      %1185 = dma.done [#allocation3], 256
    $region45: #{block_forward.1} parent=1 // pred_fallthru
      _
    %1186 = vsyncpa [#allocation3], 1

</llo_original>
